<compile_context>
chip_gen: v7x
topology: tpu7x:2x2x1
jax: 0.10.0
libtpu: 0.0.40
codegen_flags: <defaults>
</compile_context>

<pallas_src>
import jax
import jax.numpy as jnp
from jax.experimental import pallas as pl
from jax.experimental.pallas import tpu as pltpu
import numpy as np


def _sigmoid(x):
    # sigmoid(x) == 0.5 * (tanh(x / 2) + 1): single EUP transcendental.
    return 0.5 * (jnp.tanh(0.5 * x) + 1.0)


def lstm_kernel(tok_ref, emb_ref, lstm_ref, fc_ref, out_ref):
    TBP = tok_ref.shape[0]            # T * BP (time-major, batch padded to 8)
    V, E = emb_ref.shape              # vocab, embedding_dim
    H = lstm_ref.shape[1] // 4        # hidden_dim
    BP = out_ref.shape[0]             # padded batch (full sublane tile)
    T = TBP // BP

    # Hoist all weights into locals (vreg-resident for the whole recurrence).
    wih = lstm_ref[0:E, :]                       # (E, 4H)
    whh = lstm_ref[E:E + H, :]                   # (H, 4H)
    b = lstm_ref[E + H:E + H + 1, :]             # (1, 4H)
    wfc = fc_ref[0:H, :]                         # (H, 128)  lane-padded
    bfc = fc_ref[H:H + 1, :]                     # (1, 128)  lane-padded

    # Phase 0: in-kernel embedding gather as a one-hot MXU matmul (no separate
    # XLA gather, no HBM round trip of the embedded tensor).
    ids = tok_ref[...]                                               # (TBP, 1)
    onehot = (jax.lax.broadcasted_iota(jnp.int32, (TBP, V), 1) == ids
              ).astype(jnp.float32)                                  # (TBP, V)
    emb = jnp.dot(onehot, emb_ref[...],
                  preferred_element_type=jnp.float32)                # (TBP, E)

    # Phase 1: hoisted input projection for EVERY timestep — one MXU matmul.
    xg = jnp.dot(emb, wih, preferred_element_type=jnp.float32) + b   # (TBP,4H)

    # Phase 2: the unavoidable serial recurrence.  Per step: one small
    # h @ W_hh matmul (MXU) + one EUP tanh over the stacked gates + VPU math.
    h = jnp.zeros((BP, H), jnp.float32)
    c = jnp.zeros((BP, H), jnp.float32)
    for t in range(T):  # static T -> fully unrolled, aligned (8,128) slices
        gates = xg[t * BP:(t + 1) * BP, :] + jnp.dot(
            h, whh, preferred_element_type=jnp.float32)              # (BP, 4H)

        # Single EUP pass: tanh over [gates/2 ; gates] stacked on sublanes.
        stacked = jnp.tanh(jnp.concatenate([0.5 * gates, gates], axis=0))
        sg = 0.5 * (stacked[:BP, :] + 1.0)     # sigmoid(gates)
        tg = stacked[BP:, :]                   # tanh(gates)

        i_g = sg[:, 0 * H:1 * H]
        f_g = sg[:, 1 * H:2 * H]
        g_g = tg[:, 2 * H:3 * H]
        o_g = sg[:, 3 * H:4 * H]

        c = f_g * c + i_g * g_g
        h = o_g * jnp.tanh(c)

    # fc on the last hidden state + sigmoid; lane-dense (BP, 128) store.
    logits = jnp.dot(h, wfc, preferred_element_type=jnp.float32) + bfc
    out_ref[...] = _sigmoid(logits)


def lstm_net_forward(tokens, emb_table, w_ih, w_hh, b_gates, w_fc, b_fc):
    """tokens: (B, T) int32; returns (B, output_dim) float32."""
    B, T = tokens.shape
    E = emb_table.shape[1]
    H = w_hh.shape[0]
    O = w_fc.shape[1]
    BP = max(8, ((B + 7) // 8) * 8)    # pad batch to a full sublane tile
    OP = 128                           # lane-dense output width

    # --- parameter packing (one-time prep in a real model) ------------------
    lstm_slab = jnp.concatenate(
        [w_ih, w_hh, b_gates.reshape(1, 4 * H)], axis=0).astype(jnp.float32)
    wfc_pad = jnp.zeros((H, OP), jnp.float32).at[:, :O].set(w_fc)
    bfc_pad = jnp.zeros((1, OP), jnp.float32).at[:, :O].set(b_fc.reshape(1, O))
    fc_slab = jnp.concatenate([wfc_pad, bfc_pad], axis=0)

    # Time-major, sublane-padded token ids (pad rows use token 0; their h/c
    # rows evolve independently and are sliced off at the end).
    tok_pad = jnp.pad(tokens.astype(jnp.int32), ((0, BP - B), (0, 0)))
    tok_tm = tok_pad.T.reshape(T * BP, 1)

    vmem = pltpu.MemorySpace.VMEM
    out = pl.pallas_call(
        lstm_kernel,
        out_shape=jax.ShapeDtypeStruct((BP, OP), jnp.float32),
        in_specs=[pl.BlockSpec(memory_space=vmem)] * 4,
        out_specs=pl.BlockSpec(memory_space=vmem),
    )(tok_tm, emb_table.astype(jnp.float32), lstm_slab, fc_slab)
    return out[:B, :O]


def lstm_net_reference(tokens, emb_table, w_ih, w_hh, b_gates, w_fc, b_fc):
    """Pure-JAX reference matching PyTorch semantics (for sanity checking)."""
    B = tokens.shape[0]
    H = w_hh.shape[0]
    emb = jnp.take(emb_table, tokens, axis=0)  # (B, T, E)

    def step(carry, x_t):
        h, c = carry
        gates = x_t @ w_ih + h @ w_hh + b_gates[0]
        i = jax.nn.sigmoid(gates[:, 0 * H:1 * H])
        f = jax.nn.sigmoid(gates[:, 1 * H:2 * H])
        g = jnp.tanh(gates[:, 2 * H:3 * H])
        o = jax.nn.sigmoid(gates[:, 3 * H:4 * H])
        c = f * c + i * g
        h = o * jnp.tanh(c)
        return (h, c), None

    h0 = jnp.zeros((B, H), jnp.float32)
    c0 = jnp.zeros((B, H), jnp.float32)
    (h_T, _), _ = jax.lax.scan(step, (h0, c0), jnp.transpose(emb, (1, 0, 2)))
    return jax.nn.sigmoid(h_T @ w_fc + b_fc[0])


if __name__ == "__main__":
    # Small shapes consistent with the module's forward.
    vocab_size, embedding_dim, hidden_dim, output_dim = 50, 16, 32, 2
    B, T = 2, 8

    key = jax.random.PRNGKey(0)
    k_tok, k_emb, k_wih, k_whh, k_bih, k_bhh, k_wfc, k_bfc = jax.random.split(key, 8)

    scale = 1.0 / np.sqrt(hidden_dim)
    tokens = jax.random.randint(k_tok, (B, T), 0, vocab_size, dtype=jnp.int32)
    emb_table = jax.random.normal(k_emb, (vocab_size, embedding_dim), jnp.float32)
    # PyTorch stores weight_ih as (4H, E); we keep the transposed (E, 4H) layout.
    w_ih = jax.random.uniform(k_wih, (embedding_dim, 4 * hidden_dim),
                              jnp.float32, -scale, scale)
    w_hh = jax.random.uniform(k_whh, (hidden_dim, 4 * hidden_dim),
                              jnp.float32, -scale, scale)
    b_ih = jax.random.uniform(k_bih, (1, 4 * hidden_dim), jnp.float32, -scale, scale)
    b_hh = jax.random.uniform(k_bhh, (1, 4 * hidden_dim), jnp.float32, -scale, scale)
    b_gates = b_ih + b_hh
    w_fc = jax.random.uniform(k_wfc, (hidden_dim, output_dim),
                              jnp.float32, -scale, scale)
    b_fc = jax.random.uniform(k_bfc, (1, output_dim), jnp.float32, -scale, scale)

    out = lstm_net_forward(tokens, emb_table, w_ih, w_hh, b_gates, w_fc, b_fc)
    out = jax.block_until_ready(out)

    ref = lstm_net_reference(tokens, emb_table, w_ih, w_hh, b_gates, w_fc, b_fc)
    np.testing.assert_allclose(np.asarray(out), np.asarray(ref),
                               rtol=1e-5, atol=1e-5)
    print("KERNEL_OK")
</pallas_src>

<mosaic_0001>
module attributes {stable_mosaic.version = 11 : i64} {
  func.func @lstm_kernel(%arg0: memref<64x1xi32, #tpu.memory_space<vmem>>, %arg1: memref<50x16xf32, #tpu.memory_space<vmem>>, %arg2: memref<49x128xf32, #tpu.memory_space<vmem>>, %arg3: memref<33x128xf32, #tpu.memory_space<vmem>>, %arg4: memref<8x128xf32, #tpu.memory_space<vmem>>) attributes {dimension_semantics = [], scalar_prefetch = 0 : i64, scratch_operands = 0 : i64, tpu.core_type = #tpu.core_type<tc>} {
    %c0 = arith.constant 0 : index
    %c0_0 = arith.constant 0 : index
    %0 = vector.load %arg2[%c0, %c0_0] : memref<49x128xf32, #tpu.memory_space<vmem>>, vector<16x128xf32>
    %c16 = arith.constant 16 : index
    %c0_1 = arith.constant 0 : index
    %1 = vector.load %arg2[%c16, %c0_1] : memref<49x128xf32, #tpu.memory_space<vmem>>, vector<32x128xf32>
    %c48 = arith.constant 48 : index
    %c0_2 = arith.constant 0 : index
    %2 = vector.load %arg2[%c48, %c0_2] : memref<49x128xf32, #tpu.memory_space<vmem>>, vector<1x128xf32>
    %c0_3 = arith.constant 0 : index
    %c0_4 = arith.constant 0 : index
    %3 = vector.load %arg3[%c0_3, %c0_4] : memref<33x128xf32, #tpu.memory_space<vmem>>, vector<32x128xf32>
    %c32 = arith.constant 32 : index
    %c0_5 = arith.constant 0 : index
    %4 = vector.load %arg3[%c32, %c0_5] : memref<33x128xf32, #tpu.memory_space<vmem>>, vector<1x128xf32>
    %c0_6 = arith.constant 0 : index
    %c0_7 = arith.constant 0 : index
    %5 = vector.load %arg0[%c0_6, %c0_7] : memref<64x1xi32, #tpu.memory_space<vmem>>, vector<64x1xi32>
    %6 = tpu.iota {dimensions = array<i32: 1>} : vector<64x50xi32>
    %7 = vector.broadcast %5 : vector<64x1xi32> to vector<64x50xi32>
    %8 = arith.cmpi eq, %6, %7 : vector<64x50xi32>
    %9 = arith.extui %8 : vector<64x50xi1> to vector<64x50xi32>
    %10 = arith.sitofp %9 : vector<64x50xi32> to vector<64x50xf32>
    %c0_8 = arith.constant 0 : index
    %c0_9 = arith.constant 0 : index
    %11 = vector.load %arg1[%c0_8, %c0_9] : memref<50x16xf32, #tpu.memory_space<vmem>>, vector<50x16xf32>
    %cst = arith.constant dense<0.000000e+00> : vector<64x16xf32>
    %12 = tpu.matmul %10, %11, %cst {dimension_numbers = #tpu.dot_dimension_numbers<[1], [0], [0], [1], [0, 0, 1, 1], [], []>} : vector<64x50xf32>, vector<50x16xf32>, vector<64x16xf32> -> vector<64x16xf32>
    %cst_10 = arith.constant dense<0.000000e+00> : vector<64x128xf32>
    %13 = tpu.matmul %12, %0, %cst_10 {dimension_numbers = #tpu.dot_dimension_numbers<[1], [0], [0], [1], [0, 0, 1, 1], [], []>} : vector<64x16xf32>, vector<16x128xf32>, vector<64x128xf32> -> vector<64x128xf32>
    %14 = vector.broadcast %2 : vector<1x128xf32> to vector<64x128xf32>
    %15 = arith.addf %13, %14 : vector<64x128xf32>
    %cst_11 = arith.constant 0.000000e+00 : f32
    %16 = vector.broadcast %cst_11 : f32 to vector<8x32xf32>
    %cst_12 = arith.constant 0.000000e+00 : f32
    %17 = vector.broadcast %cst_12 : f32 to vector<8x32xf32>
    %18 = vector.extract_strided_slice %15 {offsets = [0, 0], sizes = [8, 128], strides = [1, 1]} : vector<64x128xf32> to vector<8x128xf32>
    %cst_13 = arith.constant dense<0.000000e+00> : vector<8x128xf32>
    %19 = tpu.matmul %16, %1, %cst_13 {dimension_numbers = #tpu.dot_dimension_numbers<[1], [0], [0], [1], [0, 0, 1, 1], [], []>} : vector<8x32xf32>, vector<32x128xf32>, vector<8x128xf32> -> vector<8x128xf32>
    %20 = arith.addf %18, %19 : vector<8x128xf32>
    %cst_14 = arith.constant 5.000000e-01 : f32
    %21 = vector.broadcast %cst_14 : f32 to vector<8x128xf32>
    %22 = arith.mulf %21, %20 : vector<8x128xf32>
    %23 = tpu.concatenate %22, %20 in 0 : vector<8x128xf32>, vector<8x128xf32> -> vector<16x128xf32>
    %24 = math.tanh %23 : vector<16x128xf32>
    %25 = vector.extract_strided_slice %24 {offsets = [0, 0], sizes = [8, 128], strides = [1, 1]} : vector<16x128xf32> to vector<8x128xf32>
    %cst_15 = arith.constant 1.000000e+00 : f32
    %26 = vector.broadcast %cst_15 : f32 to vector<8x128xf32>
    %27 = arith.addf %25, %26 : vector<8x128xf32>
    %cst_16 = arith.constant 5.000000e-01 : f32
    %28 = vector.broadcast %cst_16 : f32 to vector<8x128xf32>
    %29 = arith.mulf %28, %27 : vector<8x128xf32>
    %30 = vector.extract_strided_slice %24 {offsets = [8, 0], sizes = [8, 128], strides = [1, 1]} : vector<16x128xf32> to vector<8x128xf32>
    %31 = vector.extract_strided_slice %29 {offsets = [0, 0], sizes = [8, 32], strides = [1, 1]} : vector<8x128xf32> to vector<8x32xf32>
    %32 = vector.extract_strided_slice %29 {offsets = [0, 32], sizes = [8, 32], strides = [1, 1]} : vector<8x128xf32> to vector<8x32xf32>
    %33 = vector.extract_strided_slice %30 {offsets = [0, 64], sizes = [8, 32], strides = [1, 1]} : vector<8x128xf32> to vector<8x32xf32>
    %34 = vector.extract_strided_slice %29 {offsets = [0, 96], sizes = [8, 32], strides = [1, 1]} : vector<8x128xf32> to vector<8x32xf32>
    %35 = arith.mulf %32, %17 : vector<8x32xf32>
    %36 = arith.mulf %31, %33 : vector<8x32xf32>
    %37 = arith.addf %35, %36 : vector<8x32xf32>
    %38 = math.tanh %37 : vector<8x32xf32>
    %39 = arith.mulf %34, %38 : vector<8x32xf32>
    %40 = vector.extract_strided_slice %15 {offsets = [8, 0], sizes = [8, 128], strides = [1, 1]} : vector<64x128xf32> to vector<8x128xf32>
    %cst_17 = arith.constant dense<0.000000e+00> : vector<8x128xf32>
    %41 = tpu.matmul %39, %1, %cst_17 {dimension_numbers = #tpu.dot_dimension_numbers<[1], [0], [0], [1], [0, 0, 1, 1], [], []>} : vector<8x32xf32>, vector<32x128xf32>, vector<8x128xf32> -> vector<8x128xf32>
    %42 = arith.addf %40, %41 : vector<8x128xf32>
    %cst_18 = arith.constant 5.000000e-01 : f32
    %43 = vector.broadcast %cst_18 : f32 to vector<8x128xf32>
    %44 = arith.mulf %43, %42 : vector<8x128xf32>
    %45 = tpu.concatenate %44, %42 in 0 : vector<8x128xf32>, vector<8x128xf32> -> vector<16x128xf32>
    %46 = math.tanh %45 : vector<16x128xf32>
    %47 = vector.extract_strided_slice %46 {offsets = [0, 0], sizes = [8, 128], strides = [1, 1]} : vector<16x128xf32> to vector<8x128xf32>
    %cst_19 = arith.constant 1.000000e+00 : f32
    %48 = vector.broadcast %cst_19 : f32 to vector<8x128xf32>
    %49 = arith.addf %47, %48 : vector<8x128xf32>
    %cst_20 = arith.constant 5.000000e-01 : f32
    %50 = vector.broadcast %cst_20 : f32 to vector<8x128xf32>
    %51 = arith.mulf %50, %49 : vector<8x128xf32>
    %52 = vector.extract_strided_slice %46 {offsets = [8, 0], sizes = [8, 128], strides = [1, 1]} : vector<16x128xf32> to vector<8x128xf32>
    %53 = vector.extract_strided_slice %51 {offsets = [0, 0], sizes = [8, 32], strides = [1, 1]} : vector<8x128xf32> to vector<8x32xf32>
    %54 = vector.extract_strided_slice %51 {offsets = [0, 32], sizes = [8, 32], strides = [1, 1]} : vector<8x128xf32> to vector<8x32xf32>
    %55 = vector.extract_strided_slice %52 {offsets = [0, 64], sizes = [8, 32], strides = [1, 1]} : vector<8x128xf32> to vector<8x32xf32>
    %56 = vector.extract_strided_slice %51 {offsets = [0, 96], sizes = [8, 32], strides = [1, 1]} : vector<8x128xf32> to vector<8x32xf32>
    %57 = arith.mulf %54, %37 : vector<8x32xf32>
    %58 = arith.mulf %53, %55 : vector<8x32xf32>
    %59 = arith.addf %57, %58 : vector<8x32xf32>
    %60 = math.tanh %59 : vector<8x32xf32>
    %61 = arith.mulf %56, %60 : vector<8x32xf32>
    %62 = vector.extract_strided_slice %15 {offsets = [16, 0], sizes = [8, 128], strides = [1, 1]} : vector<64x128xf32> to vector<8x128xf32>
    %cst_21 = arith.constant dense<0.000000e+00> : vector<8x128xf32>
    %63 = tpu.matmul %61, %1, %cst_21 {dimension_numbers = #tpu.dot_dimension_numbers<[1], [0], [0], [1], [0, 0, 1, 1], [], []>} : vector<8x32xf32>, vector<32x128xf32>, vector<8x128xf32> -> vector<8x128xf32>
    %64 = arith.addf %62, %63 : vector<8x128xf32>
    %cst_22 = arith.constant 5.000000e-01 : f32
    %65 = vector.broadcast %cst_22 : f32 to vector<8x128xf32>
    %66 = arith.mulf %65, %64 : vector<8x128xf32>
    %67 = tpu.concatenate %66, %64 in 0 : vector<8x128xf32>, vector<8x128xf32> -> vector<16x128xf32>
    %68 = math.tanh %67 : vector<16x128xf32>
    %69 = vector.extract_strided_slice %68 {offsets = [0, 0], sizes = [8, 128], strides = [1, 1]} : vector<16x128xf32> to vector<8x128xf32>
    %cst_23 = arith.constant 1.000000e+00 : f32
    %70 = vector.broadcast %cst_23 : f32 to vector<8x128xf32>
    %71 = arith.addf %69, %70 : vector<8x128xf32>
    %cst_24 = arith.constant 5.000000e-01 : f32
    %72 = vector.broadcast %cst_24 : f32 to vector<8x128xf32>
    %73 = arith.mulf %72, %71 : vector<8x128xf32>
    %74 = vector.extract_strided_slice %68 {offsets = [8, 0], sizes = [8, 128], strides = [1, 1]} : vector<16x128xf32> to vector<8x128xf32>
    %75 = vector.extract_strided_slice %73 {offsets = [0, 0], sizes = [8, 32], strides = [1, 1]} : vector<8x128xf32> to vector<8x32xf32>
    %76 = vector.extract_strided_slice %73 {offsets = [0, 32], sizes = [8, 32], strides = [1, 1]} : vector<8x128xf32> to vector<8x32xf32>
    %77 = vector.extract_strided_slice %74 {offsets = [0, 64], sizes = [8, 32], strides = [1, 1]} : vector<8x128xf32> to vector<8x32xf32>
    %78 = vector.extract_strided_slice %73 {offsets = [0, 96], sizes = [8, 32], strides = [1, 1]} : vector<8x128xf32> to vector<8x32xf32>
    %79 = arith.mulf %76, %59 : vector<8x32xf32>
    %80 = arith.mulf %75, %77 : vector<8x32xf32>
    %81 = arith.addf %79, %80 : vector<8x32xf32>
    %82 = math.tanh %81 : vector<8x32xf32>
    %83 = arith.mulf %78, %82 : vector<8x32xf32>
    %84 = vector.extract_strided_slice %15 {offsets = [24, 0], sizes = [8, 128], strides = [1, 1]} : vector<64x128xf32> to vector<8x128xf32>
    %cst_25 = arith.constant dense<0.000000e+00> : vector<8x128xf32>
    %85 = tpu.matmul %83, %1, %cst_25 {dimension_numbers = #tpu.dot_dimension_numbers<[1], [0], [0], [1], [0, 0, 1, 1], [], []>} : vector<8x32xf32>, vector<32x128xf32>, vector<8x128xf32> -> vector<8x128xf32>
    %86 = arith.addf %84, %85 : vector<8x128xf32>
    %cst_26 = arith.constant 5.000000e-01 : f32
    %87 = vector.broadcast %cst_26 : f32 to vector<8x128xf32>
    %88 = arith.mulf %87, %86 : vector<8x128xf32>
    %89 = tpu.concatenate %88, %86 in 0 : vector<8x128xf32>, vector<8x128xf32> -> vector<16x128xf32>
    %90 = math.tanh %89 : vector<16x128xf32>
    %91 = vector.extract_strided_slice %90 {offsets = [0, 0], sizes = [8, 128], strides = [1, 1]} : vector<16x128xf32> to vector<8x128xf32>
    %cst_27 = arith.constant 1.000000e+00 : f32
    %92 = vector.broadcast %cst_27 : f32 to vector<8x128xf32>
    %93 = arith.addf %91, %92 : vector<8x128xf32>
    %cst_28 = arith.constant 5.000000e-01 : f32
    %94 = vector.broadcast %cst_28 : f32 to vector<8x128xf32>
    %95 = arith.mulf %94, %93 : vector<8x128xf32>
    %96 = vector.extract_strided_slice %90 {offsets = [8, 0], sizes = [8, 128], strides = [1, 1]} : vector<16x128xf32> to vector<8x128xf32>
    %97 = vector.extract_strided_slice %95 {offsets = [0, 0], sizes = [8, 32], strides = [1, 1]} : vector<8x128xf32> to vector<8x32xf32>
    %98 = vector.extract_strided_slice %95 {offsets = [0, 32], sizes = [8, 32], strides = [1, 1]} : vector<8x128xf32> to vector<8x32xf32>
    %99 = vector.extract_strided_slice %96 {offsets = [0, 64], sizes = [8, 32], strides = [1, 1]} : vector<8x128xf32> to vector<8x32xf32>
    %100 = vector.extract_strided_slice %95 {offsets = [0, 96], sizes = [8, 32], strides = [1, 1]} : vector<8x128xf32> to vector<8x32xf32>
    %101 = arith.mulf %98, %81 : vector<8x32xf32>
    %102 = arith.mulf %97, %99 : vector<8x32xf32>
    %103 = arith.addf %101, %102 : vector<8x32xf32>
    %104 = math.tanh %103 : vector<8x32xf32>
    %105 = arith.mulf %100, %104 : vector<8x32xf32>
    %106 = vector.extract_strided_slice %15 {offsets = [32, 0], sizes = [8, 128], strides = [1, 1]} : vector<64x128xf32> to vector<8x128xf32>
    %cst_29 = arith.constant dense<0.000000e+00> : vector<8x128xf32>
    %107 = tpu.matmul %105, %1, %cst_29 {dimension_numbers = #tpu.dot_dimension_numbers<[1], [0], [0], [1], [0, 0, 1, 1], [], []>} : vector<8x32xf32>, vector<32x128xf32>, vector<8x128xf32> -> vector<8x128xf32>
    %108 = arith.addf %106, %107 : vector<8x128xf32>
    %cst_30 = arith.constant 5.000000e-01 : f32
    %109 = vector.broadcast %cst_30 : f32 to vector<8x128xf32>
    %110 = arith.mulf %109, %108 : vector<8x128xf32>
    %111 = tpu.concatenate %110, %108 in 0 : vector<8x128xf32>, vector<8x128xf32> -> vector<16x128xf32>
    %112 = math.tanh %111 : vector<16x128xf32>
    %113 = vector.extract_strided_slice %112 {offsets = [0, 0], sizes = [8, 128], strides = [1, 1]} : vector<16x128xf32> to vector<8x128xf32>
    %cst_31 = arith.constant 1.000000e+00 : f32
    %114 = vector.broadcast %cst_31 : f32 to vector<8x128xf32>
    %115 = arith.addf %113, %114 : vector<8x128xf32>
    %cst_32 = arith.constant 5.000000e-01 : f32
    %116 = vector.broadcast %cst_32 : f32 to vector<8x128xf32>
    %117 = arith.mulf %116, %115 : vector<8x128xf32>
    %118 = vector.extract_strided_slice %112 {offsets = [8, 0], sizes = [8, 128], strides = [1, 1]} : vector<16x128xf32> to vector<8x128xf32>
    %119 = vector.extract_strided_slice %117 {offsets = [0, 0], sizes = [8, 32], strides = [1, 1]} : vector<8x128xf32> to vector<8x32xf32>
    %120 = vector.extract_strided_slice %117 {offsets = [0, 32], sizes = [8, 32], strides = [1, 1]} : vector<8x128xf32> to vector<8x32xf32>
    %121 = vector.extract_strided_slice %118 {offsets = [0, 64], sizes = [8, 32], strides = [1, 1]} : vector<8x128xf32> to vector<8x32xf32>
    %122 = vector.extract_strided_slice %117 {offsets = [0, 96], sizes = [8, 32], strides = [1, 1]} : vector<8x128xf32> to vector<8x32xf32>
    %123 = arith.mulf %120, %103 : vector<8x32xf32>
    %124 = arith.mulf %119, %121 : vector<8x32xf32>
    %125 = arith.addf %123, %124 : vector<8x32xf32>
    %126 = math.tanh %125 : vector<8x32xf32>
    %127 = arith.mulf %122, %126 : vector<8x32xf32>
    %128 = vector.extract_strided_slice %15 {offsets = [40, 0], sizes = [8, 128], strides = [1, 1]} : vector<64x128xf32> to vector<8x128xf32>
    %cst_33 = arith.constant dense<0.000000e+00> : vector<8x128xf32>
    %129 = tpu.matmul %127, %1, %cst_33 {dimension_numbers = #tpu.dot_dimension_numbers<[1], [0], [0], [1], [0, 0, 1, 1], [], []>} : vector<8x32xf32>, vector<32x128xf32>, vector<8x128xf32> -> vector<8x128xf32>
    %130 = arith.addf %128, %129 : vector<8x128xf32>
    %cst_34 = arith.constant 5.000000e-01 : f32
    %131 = vector.broadcast %cst_34 : f32 to vector<8x128xf32>
    %132 = arith.mulf %131, %130 : vector<8x128xf32>
    %133 = tpu.concatenate %132, %130 in 0 : vector<8x128xf32>, vector<8x128xf32> -> vector<16x128xf32>
    %134 = math.tanh %133 : vector<16x128xf32>
    %135 = vector.extract_strided_slice %134 {offsets = [0, 0], sizes = [8, 128], strides = [1, 1]} : vector<16x128xf32> to vector<8x128xf32>
    %cst_35 = arith.constant 1.000000e+00 : f32
    %136 = vector.broadcast %cst_35 : f32 to vector<8x128xf32>
    %137 = arith.addf %135, %136 : vector<8x128xf32>
    %cst_36 = arith.constant 5.000000e-01 : f32
    %138 = vector.broadcast %cst_36 : f32 to vector<8x128xf32>
    %139 = arith.mulf %138, %137 : vector<8x128xf32>
    %140 = vector.extract_strided_slice %134 {offsets = [8, 0], sizes = [8, 128], strides = [1, 1]} : vector<16x128xf32> to vector<8x128xf32>
    %141 = vector.extract_strided_slice %139 {offsets = [0, 0], sizes = [8, 32], strides = [1, 1]} : vector<8x128xf32> to vector<8x32xf32>
    %142 = vector.extract_strided_slice %139 {offsets = [0, 32], sizes = [8, 32], strides = [1, 1]} : vector<8x128xf32> to vector<8x32xf32>
    %143 = vector.extract_strided_slice %140 {offsets = [0, 64], sizes = [8, 32], strides = [1, 1]} : vector<8x128xf32> to vector<8x32xf32>
    %144 = vector.extract_strided_slice %139 {offsets = [0, 96], sizes = [8, 32], strides = [1, 1]} : vector<8x128xf32> to vector<8x32xf32>
    %145 = arith.mulf %142, %125 : vector<8x32xf32>
    %146 = arith.mulf %141, %143 : vector<8x32xf32>
    %147 = arith.addf %145, %146 : vector<8x32xf32>
    %148 = math.tanh %147 : vector<8x32xf32>
    %149 = arith.mulf %144, %148 : vector<8x32xf32>
    %150 = vector.extract_strided_slice %15 {offsets = [48, 0], sizes = [8, 128], strides = [1, 1]} : vector<64x128xf32> to vector<8x128xf32>
    %cst_37 = arith.constant dense<0.000000e+00> : vector<8x128xf32>
    %151 = tpu.matmul %149, %1, %cst_37 {dimension_numbers = #tpu.dot_dimension_numbers<[1], [0], [0], [1], [0, 0, 1, 1], [], []>} : vector<8x32xf32>, vector<32x128xf32>, vector<8x128xf32> -> vector<8x128xf32>
    %152 = arith.addf %150, %151 : vector<8x128xf32>
    %cst_38 = arith.constant 5.000000e-01 : f32
    %153 = vector.broadcast %cst_38 : f32 to vector<8x128xf32>
    %154 = arith.mulf %153, %152 : vector<8x128xf32>
    %155 = tpu.concatenate %154, %152 in 0 : vector<8x128xf32>, vector<8x128xf32> -> vector<16x128xf32>
    %156 = math.tanh %155 : vector<16x128xf32>
    %157 = vector.extract_strided_slice %156 {offsets = [0, 0], sizes = [8, 128], strides = [1, 1]} : vector<16x128xf32> to vector<8x128xf32>
    %cst_39 = arith.constant 1.000000e+00 : f32
    %158 = vector.broadcast %cst_39 : f32 to vector<8x128xf32>
    %159 = arith.addf %157, %158 : vector<8x128xf32>
    %cst_40 = arith.constant 5.000000e-01 : f32
    %160 = vector.broadcast %cst_40 : f32 to vector<8x128xf32>
    %161 = arith.mulf %160, %159 : vector<8x128xf32>
    %162 = vector.extract_strided_slice %156 {offsets = [8, 0], sizes = [8, 128], strides = [1, 1]} : vector<16x128xf32> to vector<8x128xf32>
    %163 = vector.extract_strided_slice %161 {offsets = [0, 0], sizes = [8, 32], strides = [1, 1]} : vector<8x128xf32> to vector<8x32xf32>
    %164 = vector.extract_strided_slice %161 {offsets = [0, 32], sizes = [8, 32], strides = [1, 1]} : vector<8x128xf32> to vector<8x32xf32>
    %165 = vector.extract_strided_slice %162 {offsets = [0, 64], sizes = [8, 32], strides = [1, 1]} : vector<8x128xf32> to vector<8x32xf32>
    %166 = vector.extract_strided_slice %161 {offsets = [0, 96], sizes = [8, 32], strides = [1, 1]} : vector<8x128xf32> to vector<8x32xf32>
    %167 = arith.mulf %164, %147 : vector<8x32xf32>
    %168 = arith.mulf %163, %165 : vector<8x32xf32>
    %169 = arith.addf %167, %168 : vector<8x32xf32>
    %170 = math.tanh %169 : vector<8x32xf32>
    %171 = arith.mulf %166, %170 : vector<8x32xf32>
    %172 = vector.extract_strided_slice %15 {offsets = [56, 0], sizes = [8, 128], strides = [1, 1]} : vector<64x128xf32> to vector<8x128xf32>
    %cst_41 = arith.constant dense<0.000000e+00> : vector<8x128xf32>
    %173 = tpu.matmul %171, %1, %cst_41 {dimension_numbers = #tpu.dot_dimension_numbers<[1], [0], [0], [1], [0, 0, 1, 1], [], []>} : vector<8x32xf32>, vector<32x128xf32>, vector<8x128xf32> -> vector<8x128xf32>
    %174 = arith.addf %172, %173 : vector<8x128xf32>
    %cst_42 = arith.constant 5.000000e-01 : f32
    %175 = vector.broadcast %cst_42 : f32 to vector<8x128xf32>
    %176 = arith.mulf %175, %174 : vector<8x128xf32>
    %177 = tpu.concatenate %176, %174 in 0 : vector<8x128xf32>, vector<8x128xf32> -> vector<16x128xf32>
    %178 = math.tanh %177 : vector<16x128xf32>
    %179 = vector.extract_strided_slice %178 {offsets = [0, 0], sizes = [8, 128], strides = [1, 1]} : vector<16x128xf32> to vector<8x128xf32>
    %cst_43 = arith.constant 1.000000e+00 : f32
    %180 = vector.broadcast %cst_43 : f32 to vector<8x128xf32>
    %181 = arith.addf %179, %180 : vector<8x128xf32>
    %cst_44 = arith.constant 5.000000e-01 : f32
    %182 = vector.broadcast %cst_44 : f32 to vector<8x128xf32>
    %183 = arith.mulf %182, %181 : vector<8x128xf32>
    %184 = vector.extract_strided_slice %178 {offsets = [8, 0], sizes = [8, 128], strides = [1, 1]} : vector<16x128xf32> to vector<8x128xf32>
    %185 = vector.extract_strided_slice %183 {offsets = [0, 0], sizes = [8, 32], strides = [1, 1]} : vector<8x128xf32> to vector<8x32xf32>
    %186 = vector.extract_strided_slice %183 {offsets = [0, 32], sizes = [8, 32], strides = [1, 1]} : vector<8x128xf32> to vector<8x32xf32>
    %187 = vector.extract_strided_slice %184 {offsets = [0, 64], sizes = [8, 32], strides = [1, 1]} : vector<8x128xf32> to vector<8x32xf32>
    %188 = vector.extract_strided_slice %183 {offsets = [0, 96], sizes = [8, 32], strides = [1, 1]} : vector<8x128xf32> to vector<8x32xf32>
    %189 = arith.mulf %186, %169 : vector<8x32xf32>
    %190 = arith.mulf %185, %187 : vector<8x32xf32>
    %191 = arith.addf %189, %190 : vector<8x32xf32>
    %192 = math.tanh %191 : vector<8x32xf32>
    %193 = arith.mulf %188, %192 : vector<8x32xf32>
    %cst_45 = arith.constant dense<0.000000e+00> : vector<8x128xf32>
    %194 = tpu.matmul %193, %3, %cst_45 {dimension_numbers = #tpu.dot_dimension_numbers<[1], [0], [0], [1], [0, 0, 1, 1], [], []>} : vector<8x32xf32>, vector<32x128xf32>, vector<8x128xf32> -> vector<8x128xf32>
    %195 = vector.broadcast %4 : vector<1x128xf32> to vector<8x128xf32>
    %196 = arith.addf %194, %195 : vector<8x128xf32>
    %cst_46 = arith.constant 5.000000e-01 : f32
    %197 = vector.broadcast %cst_46 : f32 to vector<8x128xf32>
    %198 = arith.mulf %197, %196 : vector<8x128xf32>
    %199 = math.tanh %198 : vector<8x128xf32>
    %cst_47 = arith.constant 1.000000e+00 : f32
    %200 = vector.broadcast %cst_47 : f32 to vector<8x128xf32>
    %201 = arith.addf %199, %200 : vector<8x128xf32>
    %cst_48 = arith.constant 5.000000e-01 : f32
    %202 = vector.broadcast %cst_48 : f32 to vector<8x128xf32>
    %203 = arith.mulf %202, %201 : vector<8x128xf32>
    %c0_49 = arith.constant 0 : index
    %c0_50 = arith.constant 0 : index
    %204 = vector.load %arg4[%c0_49, %c0_50] : memref<8x128xf32, #tpu.memory_space<vmem>>, vector<8x128xf32>
    tpu.vector_store %arg4[%c0_49, %c0_50], %203 {strides = array<i32>} : memref<8x128xf32, #tpu.memory_space<vmem>>, vector<8x128xf32>,
    return
  }
}

</mosaic_0001>

<llo_original>
// kernel: tpu_custom_call.1
$region0: #{tpu_custom_call.1}
  #allocation0 [shape = 'u32[]', space=smem, size = 0x4, offset = 0x4, fixed_abs, tag = 'smem constant byte address 0x4 - core index']
  #allocation1 [shape = 'u32[144,128]{1,0:T(1,128)}', space=vmem, size = 0x12000, scoped, tag = 'internal scratch']
  %s0 = inlined_call_operand.vmem [shape: s32[64,1], index: 0, kind: input, shape index: {}]
  %s1 = inlined_call_operand.vmem [shape: f32[50,16], index: 1, kind: input, shape index: {}]
  %s2 = inlined_call_operand.vmem [shape: f32[49,128], index: 2, kind: input, shape index: {}]
  %s3 = inlined_call_operand.vmem [shape: f32[33,128], index: 3, kind: input, shape index: {}]
  %s4 = inlined_call_operand.hbm [shape: f32[8,128], index: 4, kind: output, shape index: {}]
  %s5 = sld [smem:[#allocation0]]
  $region26: #{tpu_custom_call.1} parent=0
    _
  %s7 = ssub.s32 1, %s5
  %s8 = scalar_select 0, %s7, %s5
  $region1: #{tpu_custom_call.1} parent=0
    #allocation2 [shape = 'u8[4096]{0}', space=vmem, size = 0x1000, scoped, tag = 'output window, operand 0, single buffered']
    #allocation3 [shape = 's32[1]{0}', space=sflag, size = 0x4, scoped, tag = 'scoped memory for tpu_custom_call.1']
    %9 = vsyncpa [#allocation3], 0
    // Predicated region
    $region2: #{tpu_custom_call.1} parent=1 // pred_check
      _
    $region3: #{tpu_custom_call.1} parent=1 // pred_check_branch
      %11 = sbr.rel (0) target = $region5
    $region4: #{tpu_custom_call.1} parent=1 // pred_region
      _
    $region5: #{tpu_custom_call.1} parent=1 // pred_fallthru
      _
    // Predicated region
    $region6: #{tpu_custom_call.1} parent=1 // pred_check
      _
    $region7: #{tpu_custom_call.1} parent=1 // pred_check_branch
      %13 = sbr.rel (0) target = $region9
    $region8: #{tpu_custom_call.1} parent=1 // pred_region
      _
    $region9: #{tpu_custom_call.1} parent=1 // pred_fallthru
      _
    // Predicated region
    $region10: #{tpu_custom_call.1} parent=1 // pred_check
      _
    $region11: #{tpu_custom_call.1} parent=1 // pred_check_branch
      %15 = sbr.rel (0) target = $region13
    $region12: #{tpu_custom_call.1} parent=1 // pred_region
      _
    $region13: #{tpu_custom_call.1} parent=1 // pred_fallthru
      _
    // Predicated region
    $region14: #{tpu_custom_call.1} parent=1 // pred_check
      _
    $region15: #{tpu_custom_call.1} parent=1 // pred_check_branch
      %17 = sbr.rel (0) target = $region17
    $region16: #{tpu_custom_call.1} parent=1 // pred_region
      _
    $region17: #{tpu_custom_call.1} parent=1 // pred_fallthru
      _
    %v18 = vld [vmem:[%s2] sm:$0xff]
    %v19 = vld [vmem:[%s2 + $0x8] sm:$0xff]
    %v20 = vld [vmem:[%s2 + $0x10] sm:$0xff]
    %v21 = vld [vmem:[%s2 + $0x18] sm:$0xff]
    %v22 = vld [vmem:[%s2 + $0x20] sm:$0xff]
    %v23 = vld [vmem:[%s2 + $0x28] sm:$0xff]
    %v24 = vld [vmem:[%s2 + $0x30] sm:$0x1]
    %v25 = vld [vmem:[%s3] sm:$0xff]
    %v26 = vld [vmem:[%s3 + $0x8] sm:$0xff]
    %v27 = vld [vmem:[%s3 + $0x10] sm:$0xff]
    %v28 = vld [vmem:[%s3 + $0x18] sm:$0xff]
    %v29 = vld [vmem:[%s3 + $0x20] sm:$0x1]
    %v30 = vld [vmem:[%s0] sm:$0xff]
    %v31 = vld [vmem:[%s0 + $0x8] sm:$0xff]
    %v32 = vld [vmem:[%s0 + $0x10] sm:$0xff]
    %v33 = vld [vmem:[%s0 + $0x18] sm:$0xff]
    %v34 = vld [vmem:[%s0 + $0x20] sm:$0xff]
    %v35 = vld [vmem:[%s0 + $0x28] sm:$0xff]
    %v36 = vld [vmem:[%s0 + $0x30] sm:$0xff]
    %v37 = vld [vmem:[%s0 + $0x38] sm:$0xff]
    %v38 = vlaneseq
    %v39 = vand.u32 %v38, 127
    %40 = vset.pattern.permute.xlu0 0
    %41 = vperm.xlu0 %40, %v30
    %v42 = vpop.permute.xlu0 %41
    %43 = vset.pattern.permute.xlu0 0
    %44 = vperm.xlu0 %43, %v31
    %v45 = vpop.permute.xlu0 %44
    %46 = vset.pattern.permute.xlu0 0
    %47 = vperm.xlu0 %46, %v32
    %v48 = vpop.permute.xlu0 %47
    %49 = vset.pattern.permute.xlu0 0
    %50 = vperm.xlu0 %49, %v33
    %v51 = vpop.permute.xlu0 %50
    %52 = vset.pattern.permute.xlu0 0
    %53 = vperm.xlu0 %52, %v34
    %v54 = vpop.permute.xlu0 %53
    %55 = vset.pattern.permute.xlu0 0
    %56 = vperm.xlu0 %55, %v35
    %v57 = vpop.permute.xlu0 %56
    %58 = vset.pattern.permute.xlu0 0
    %59 = vperm.xlu0 %58, %v36
    %v60 = vpop.permute.xlu0 %59
    %61 = vset.pattern.permute.xlu0 0
    %62 = vperm.xlu0 %61, %v37
    %v63 = vpop.permute.xlu0 %62
    %vm64 = vcmp.eq.s32.totalorder %v39, %v42
    %vm65 = vcmp.eq.s32.totalorder %v39, %v45
    %vm66 = vcmp.eq.s32.totalorder %v39, %v48
    %vm67 = vcmp.eq.s32.totalorder %v39, %v51
    %vm68 = vcmp.eq.s32.totalorder %v39, %v54
    %vm69 = vcmp.eq.s32.totalorder %v39, %v57
    %vm70 = vcmp.eq.s32.totalorder %v39, %v60
    %vm71 = vcmp.eq.s32.totalorder %v39, %v63
    %v72 = vsel %vm64, 1, 0
    %v73 = vsel %vm65, 1, 0
    %v74 = vsel %vm66, 1, 0
    %v75 = vsel %vm67, 1, 0
    %v76 = vsel %vm68, 1, 0
    %v77 = vsel %vm69, 1, 0
    %v78 = vsel %vm70, 1, 0
    %v79 = vsel %vm71, 1, 0
    %v80 = vcvt.s32.f32 %v72
    %v81 = vcvt.s32.f32 %v73
    %v82 = vcvt.s32.f32 %v74
    %v83 = vcvt.s32.f32 %v75
    %v84 = vcvt.s32.f32 %v76
    %v85 = vcvt.s32.f32 %v77
    %v86 = vcvt.s32.f32 %v78
    %v87 = vcvt.s32.f32 %v79
    %v88 = vld [vmem:[%s1] sm:$0xff]
    %v89 = vld [vmem:[%s1 + $0x8] sm:$0xff]
    %v90 = vld [vmem:[%s1 + $0x10] sm:$0xff]
    %v91 = vld [vmem:[%s1 + $0x18] sm:$0xff]
    %v92 = vld [vmem:[%s1 + $0x20] sm:$0xff]
    %v93 = vld [vmem:[%s1 + $0x28] sm:$0xff]
    %v94 = vld [vmem:[%s1 + $0x30] sm:$0x3]
    %vm95 = vcmask 408576
    %v97 = vsel %vm95, %v80, 0
    %v100 = vsel %vm95, %v81, 0
    %v103 = vsel %vm95, %v82, 0
    %v106 = vsel %vm95, %v83, 0
    %v109 = vsel %vm95, %v84, 0
    %v112 = vsel %vm95, %v85, 0
    %v115 = vsel %vm95, %v86, 0
    %v118 = vsel %vm95, %v87, 0
    %vm120 = vcmask 1041408
    %v122 = vsel %vm120, %v94, 0
    %124 = vmatprep.subr.mxu0 0.0
    %125 = vmatpush1.msra.mxu0 %v88
    %126 = vmatprep.subr.mxu0 0.0
    %127 = vmatpush1.msra.mxu0 %v89
    %128 = vmatprep.subr.mxu0 0.0
    %129 = vmatpush1.msra.mxu0 %v90
    %130 = vmatprep.subr.mxu0 0.0
    %131 = vmatpush1.msra.mxu0 %v91
    %132 = vmatprep.subr.mxu0 0.0
    %133 = vmatpush1.msra.mxu0 %v92
    %134 = vmatprep.subr.mxu0 0.0
    %135 = vmatpush1.msra.mxu0 %v93
    %136 = vmatprep.subr.mxu0 0.0
    %137 = vmatpush1.msra.mxu0 %v122
    %138 = vmatprep.subr.mxu0 0.0
    %139 = vmatpush1.msra.mxu0 0.0
    %140 = vmatprep.subr.mxu0 0.0
    %141 = vmatpush1.msra.mxu0 0.0
    %142 = vmatprep.subr.mxu0 0.0
    %143 = vmatpush1.msra.mxu0 0.0
    %144 = vmatprep.subr.mxu0 0.0
    %145 = vmatpush1.msra.mxu0 0.0
    %146 = vmatprep.subr.mxu0 0.0
    %147 = vmatpush1.msra.mxu0 0.0
    %148 = vmatprep.subr.mxu0 0.0
    %149 = vmatpush1.msra.mxu0 0.0
    %150 = vmatprep.subr.mxu0 0.0
    %151 = vmatpush1.msra.mxu0 0.0
    %152 = vmatprep.subr.mxu0 0.0
    %153 = vmatpush1.msra.mxu0 0.0
    %154 = vmatprep.subr.mxu0 0.0
    %155 = vmatpush1.msra.mxu0 0.0
    %156 = vmatprep.subr.mxu0 0.0
    %157 = vmatpush1.msra.mxu0 0.0
    %158 = vmatprep.subr.mxu0 0.0
    %159 = vmatpush1.msra.mxu0 0.0
    %160 = vmatprep.subr.mxu0 0.0
    %161 = vmatpush1.msra.mxu0 0.0
    %162 = vmatprep.subr.mxu0 0.0
    %163 = vmatpush1.msra.mxu0 0.0
    %164 = vmatprep.subr.mxu0 0.0
    %165 = vmatpush1.msra.mxu0 0.0
    %166 = vmatprep.subr.mxu0 0.0
    %167 = vmatpush1.msra.mxu0 0.0
    %168 = vmatprep.subr.mxu0 0.0
    %169 = vmatpush1.msra.mxu0 0.0
    %170 = vmatprep.subr.mxu0 0.0
    %171 = vmatpush1.msra.mxu0 0.0
    %172 = vmatprep.subr.mxu0 0.0
    %173 = vmatpush1.msra.mxu0 0.0
    %174 = vmatprep.subr.mxu0 0.0
    %175 = vmatpush1.msra.mxu0 0.0
    %176 = vmatprep.subr.mxu0 0.0
    %177 = vmatpush1.msra.mxu0 0.0
    %178 = vmatprep.subr.mxu0 0.0
    %179 = vmatpush1.msra.mxu0 0.0
    %180 = vmatprep.subr.mxu0 0.0
    %181 = vmatpush1.msra.mxu0 0.0
    %182 = vmatprep.subr.mxu0 0.0
    %183 = vmatpush1.msra.mxu0 0.0
    %184 = vmatprep.subr.mxu0 0.0
    %185 = vmatpush1.msra.mxu0 0.0
    %186 = vmatprep.subr.mxu0 0.0
    %187 = vmatpush1.msra.mxu0 0.0
    %188 = vmatprep.mubr.f32.mxu0 0.0
    %189 = vmatmul.mubr.f32.gmra.mrb[0].mxu0 %v97
    %v190 = vpop.f32.mrb[0].mxu0
    %v191 = vadd.f32 0.0, %v190
    %v192 = vpop.f32.mrb[0].mxu0
    %193 = vmatprep.mubr.f32.mxu0 0.0
    %194 = vmatmul.mubr.f32.gmra.mrb[0].mxu0 %v100
    %v195 = vpop.f32.mrb[0].mxu0
    %v196 = vadd.f32 0.0, %v195
    %v197 = vpop.f32.mrb[0].mxu0
    %198 = vmatprep.mubr.f32.mxu0 0.0
    %199 = vmatmul.mubr.f32.gmra.mrb[0].mxu0 %v103
    %v200 = vpop.f32.mrb[0].mxu0
    %v201 = vadd.f32 0.0, %v200
    %v202 = vpop.f32.mrb[0].mxu0
    %203 = vmatprep.mubr.f32.mxu0 0.0
    %204 = vmatmul.mubr.f32.gmra.mrb[0].mxu0 %v106
    %v205 = vpop.f32.mrb[0].mxu0
    %v206 = vadd.f32 0.0, %v205
    %v207 = vpop.f32.mrb[0].mxu0
    %208 = vmatprep.mubr.f32.mxu0 0.0
    %209 = vmatmul.mubr.f32.gmra.mrb[0].mxu0 %v109
    %v210 = vpop.f32.mrb[0].mxu0
    %v211 = vadd.f32 0.0, %v210
    %v212 = vpop.f32.mrb[0].mxu0
    %213 = vmatprep.mubr.f32.mxu0 0.0
    %214 = vmatmul.mubr.f32.gmra.mrb[0].mxu0 %v112
    %v215 = vpop.f32.mrb[0].mxu0
    %v216 = vadd.f32 0.0, %v215
    %v217 = vpop.f32.mrb[0].mxu0
    %218 = vmatprep.mubr.f32.mxu0 0.0
    %219 = vmatmul.mubr.f32.gmra.mrb[0].mxu0 %v115
    %v220 = vpop.f32.mrb[0].mxu0
    %v221 = vadd.f32 0.0, %v220
    %v222 = vpop.f32.mrb[0].mxu0
    %223 = vmatprep.mubr.f32.mxu0 0.0
    %224 = vmatmul.mubr.f32.gmra.mrb[0].mxu0 %v118
    %v225 = vpop.f32.mrb[0].mxu0
    %v226 = vadd.f32 0.0, %v225
    %v227 = vpop.f32.mrb[0].mxu0
    %228 = vdwg.mxu0
    %v229 = vlaneseq
    %v230 = vshrl.u32 %v229, 7
    %v231 = vsub.s32 0, %v230
    %v232 = vrot.slane %v24, %v231
    %vm233 = vcmask 130048
    %v235 = vsel %vm233, %v191, 0
    %v238 = vsel %vm233, %v196, 0
    %v241 = vsel %vm233, %v201, 0
    %v244 = vsel %vm233, %v206, 0
    %v247 = vsel %vm233, %v211, 0
    %v250 = vsel %vm233, %v216, 0
    %v253 = vsel %vm233, %v221, 0
    %v256 = vsel %vm233, %v226, 0
    %258 = vmatprep.subr.mxu0 0.0
    %259 = vmatpush1.msra.mxu0 %v18
    %260 = vmatprep.subr.mxu0 0.0
    %261 = vmatpush1.msra.mxu0 %v19
    %262 = vmatprep.subr.mxu0 0.0
    %263 = vmatpush1.msra.mxu0 0.0
    %264 = vmatprep.subr.mxu0 0.0
    %265 = vmatpush1.msra.mxu0 0.0
    %266 = vmatprep.subr.mxu0 0.0
    %267 = vmatpush1.msra.mxu0 0.0
    %268 = vmatprep.subr.mxu0 0.0
    %269 = vmatpush1.msra.mxu0 0.0
    %270 = vmatprep.subr.mxu0 0.0
    %271 = vmatpush1.msra.mxu0 0.0
    %272 = vmatprep.subr.mxu0 0.0
    %273 = vmatpush1.msra.mxu0 0.0
    %274 = vmatprep.subr.mxu0 0.0
    %275 = vmatpush1.msra.mxu0 0.0
    %276 = vmatprep.subr.mxu0 0.0
    %277 = vmatpush1.msra.mxu0 0.0
    %278 = vmatprep.subr.mxu0 0.0
    %279 = vmatpush1.msra.mxu0 0.0
    %280 = vmatprep.subr.mxu0 0.0
    %281 = vmatpush1.msra.mxu0 0.0
    %282 = vmatprep.subr.mxu0 0.0
    %283 = vmatpush1.msra.mxu0 0.0
    %284 = vmatprep.subr.mxu0 0.0
    %285 = vmatpush1.msra.mxu0 0.0
    %286 = vmatprep.subr.mxu0 0.0
    %287 = vmatpush1.msra.mxu0 0.0
    %288 = vmatprep.subr.mxu0 0.0
    %289 = vmatpush1.msra.mxu0 0.0
    %290 = vmatprep.subr.mxu0 0.0
    %291 = vmatpush1.msra.mxu0 0.0
    %292 = vmatprep.subr.mxu0 0.0
    %293 = vmatpush1.msra.mxu0 0.0
    %294 = vmatprep.subr.mxu0 0.0
    %295 = vmatpush1.msra.mxu0 0.0
    %296 = vmatprep.subr.mxu0 0.0
    %297 = vmatpush1.msra.mxu0 0.0
    %298 = vmatprep.subr.mxu0 0.0
    %299 = vmatpush1.msra.mxu0 0.0
    %300 = vmatprep.subr.mxu0 0.0
    %301 = vmatpush1.msra.mxu0 0.0
    %302 = vmatprep.subr.mxu0 0.0
    %303 = vmatpush1.msra.mxu0 0.0
    %304 = vmatprep.subr.mxu0 0.0
    %305 = vmatpush1.msra.mxu0 0.0
    %306 = vmatprep.subr.mxu0 0.0
    %307 = vmatpush1.msra.mxu0 0.0
    %308 = vmatprep.subr.mxu0 0.0
    %309 = vmatpush1.msra.mxu0 0.0
    %310 = vmatprep.subr.mxu0 0.0
    %311 = vmatpush1.msra.mxu0 0.0
    %312 = vmatprep.subr.mxu0 0.0
    %313 = vmatpush1.msra.mxu0 0.0
    %314 = vmatprep.subr.mxu0 0.0
    %315 = vmatpush1.msra.mxu0 0.0
    %316 = vmatprep.subr.mxu0 0.0
    %317 = vmatpush1.msra.mxu0 0.0
    %318 = vmatprep.subr.mxu0 0.0
    %319 = vmatpush1.msra.mxu0 0.0
    %320 = vmatprep.subr.mxu0 0.0
    %321 = vmatpush1.msra.mxu0 0.0
    %322 = vmatprep.mubr.f32.mxu0 0.0
    %323 = vmatmul.mubr.f32.gmra.mrb[0].mxu0 %v235
    %v324 = vpop.f32.mrb[0].mxu0
    %v325 = vadd.f32 %v232, %v324
    %v326 = vpop.f32.mrb[0].mxu0
    %327 = vmatprep.mubr.f32.mxu0 0.0
    %328 = vmatmul.mubr.f32.gmra.mrb[0].mxu0 %v238
    %v329 = vpop.f32.mrb[0].mxu0
    %v330 = vadd.f32 %v232, %v329
    %v331 = vpop.f32.mrb[0].mxu0
    %332 = vmatprep.mubr.f32.mxu0 0.0
    %333 = vmatmul.mubr.f32.gmra.mrb[0].mxu0 %v241
    %v334 = vpop.f32.mrb[0].mxu0
    %v335 = vadd.f32 %v232, %v334
    %v336 = vpop.f32.mrb[0].mxu0
    %337 = vmatprep.mubr.f32.mxu0 0.0
    %338 = vmatmul.mubr.f32.gmra.mrb[0].mxu0 %v244
    %v339 = vpop.f32.mrb[0].mxu0
    %v340 = vadd.f32 %v232, %v339
    %v341 = vpop.f32.mrb[0].mxu0
    %342 = vmatprep.mubr.f32.mxu0 0.0
    %343 = vmatmul.mubr.f32.gmra.mrb[0].mxu0 %v247
    %v344 = vpop.f32.mrb[0].mxu0
    %v345 = vadd.f32 %v232, %v344
    %v346 = vpop.f32.mrb[0].mxu0
    %347 = vmatprep.mubr.f32.mxu0 0.0
    %348 = vmatmul.mubr.f32.gmra.mrb[0].mxu0 %v250
    %v349 = vpop.f32.mrb[0].mxu0
    %v350 = vadd.f32 %v232, %v349
    %v351 = vpop.f32.mrb[0].mxu0
    %352 = vmatprep.mubr.f32.mxu0 0.0
    %353 = vmatmul.mubr.f32.gmra.mrb[0].mxu0 %v253
    %v354 = vpop.f32.mrb[0].mxu0
    %v355 = vadd.f32 %v232, %v354
    %v356 = vpop.f32.mrb[0].mxu0
    %357 = vmatprep.mubr.f32.mxu0 0.0
    %358 = vmatmul.mubr.f32.gmra.mrb[0].mxu0 %v256
    %v359 = vpop.f32.mrb[0].mxu0
    %v360 = vadd.f32 %v232, %v359
    %v361 = vpop.f32.mrb[0].mxu0
    %362 = vdwg.mxu0
    %vm363 = vcmask 261120
    %v365 = vsel %vm363, 0.0, 0
    %367 = vmatprep.subr.mxu0 0.0
    %368 = vmatpush1.msra.mxu0 %v20
    %369 = vmatprep.subr.mxu0 0.0
    %370 = vmatpush1.msra.mxu0 %v21
    %371 = vmatprep.subr.mxu0 0.0
    %372 = vmatpush1.msra.mxu0 %v22
    %373 = vmatprep.subr.mxu0 0.0
    %374 = vmatpush1.msra.mxu0 %v23
    %375 = vmatprep.subr.mxu0 0.0
    %376 = vmatpush1.msra.mxu0 0.0
    %377 = vmatprep.subr.mxu0 0.0
    %378 = vmatpush1.msra.mxu0 0.0
    %379 = vmatprep.subr.mxu0 0.0
    %380 = vmatpush1.msra.mxu0 0.0
    %381 = vmatprep.subr.mxu0 0.0
    %382 = vmatpush1.msra.mxu0 0.0
    %383 = vmatprep.subr.mxu0 0.0
    %384 = vmatpush1.msra.mxu0 0.0
    %385 = vmatprep.subr.mxu0 0.0
    %386 = vmatpush1.msra.mxu0 0.0
    %387 = vmatprep.subr.mxu0 0.0
    %388 = vmatpush1.msra.mxu0 0.0
    %389 = vmatprep.subr.mxu0 0.0
    %390 = vmatpush1.msra.mxu0 0.0
    %391 = vmatprep.subr.mxu0 0.0
    %392 = vmatpush1.msra.mxu0 0.0
    %393 = vmatprep.subr.mxu0 0.0
    %394 = vmatpush1.msra.mxu0 0.0
    %395 = vmatprep.subr.mxu0 0.0
    %396 = vmatpush1.msra.mxu0 0.0
    %397 = vmatprep.subr.mxu0 0.0
    %398 = vmatpush1.msra.mxu0 0.0
    %399 = vmatprep.subr.mxu0 0.0
    %400 = vmatpush1.msra.mxu0 0.0
    %401 = vmatprep.subr.mxu0 0.0
    %402 = vmatpush1.msra.mxu0 0.0
    %403 = vmatprep.subr.mxu0 0.0
    %404 = vmatpush1.msra.mxu0 0.0
    %405 = vmatprep.subr.mxu0 0.0
    %406 = vmatpush1.msra.mxu0 0.0
    %407 = vmatprep.subr.mxu0 0.0
    %408 = vmatpush1.msra.mxu0 0.0
    %409 = vmatprep.subr.mxu0 0.0
    %410 = vmatpush1.msra.mxu0 0.0
    %411 = vmatprep.subr.mxu0 0.0
    %412 = vmatpush1.msra.mxu0 0.0
    %413 = vmatprep.subr.mxu0 0.0
    %414 = vmatpush1.msra.mxu0 0.0
    %415 = vmatprep.subr.mxu0 0.0
    %416 = vmatpush1.msra.mxu0 0.0
    %417 = vmatprep.subr.mxu0 0.0
    %418 = vmatpush1.msra.mxu0 0.0
    %419 = vmatprep.subr.mxu0 0.0
    %420 = vmatpush1.msra.mxu0 0.0
    %421 = vmatprep.subr.mxu0 0.0
    %422 = vmatpush1.msra.mxu0 0.0
    %423 = vmatprep.subr.mxu0 0.0
    %424 = vmatpush1.msra.mxu0 0.0
    %425 = vmatprep.subr.mxu0 0.0
    %426 = vmatpush1.msra.mxu0 0.0
    %427 = vmatprep.subr.mxu0 0.0
    %428 = vmatpush1.msra.mxu0 0.0
    %429 = vmatprep.subr.mxu0 0.0
    %430 = vmatpush1.msra.mxu0 0.0
    %431 = vmatprep.mubr.f32.mxu0 0.0
    %432 = vmatmul.mubr.f32.gmra.mrb[0].mxu0 %v365
    %v433 = vpop.f32.mrb[0].mxu0
    %v434 = vadd.f32 0.0, %v433
    %v435 = vpop.f32.mrb[0].mxu0
    %436 = vdwg.mxu0
    %v437 = vadd.f32 %v325, %v434
    %v438 = vmul.f32 %v437, 0.5
    %v439 = vtanh.pop %v438
    %v440 = vtanh.pop %v437
    %v441 = vadd.f32 %v439, 1.0
    %v442 = vmul.f32 %v441, 0.5
    %v443 = vmul.f32 %v442, 0.0
    %445 = vrot.lane.b32.xlu0 %v440, 64
    %v446 = vpop.permute.xlu0 %445
    %v448 = vmul.f32 %v442, %v446
    %450 = vrot.lane.b32.xlu0 %v448, 32
    %v451 = vpop.permute.xlu0 %450
    %v453 = vadd.f32 %v443, %v451
    %v454 = vtanh.pop %v453
    %456 = vrot.lane.b32.xlu0 %v454, 64
    %v457 = vpop.permute.xlu0 %456
    %v459 = vmul.f32 %v442, %v457
    %461 = vrot.lane.b32.xlu0 %v459, 32
    %v462 = vpop.permute.xlu0 %461
    %v463 = vsel %vm363, %v462, 0
    %465 = vmatprep.subr.mxu0 0.0
    %466 = vmatpush1.msra.mxu0 %v20
    %467 = vmatprep.subr.mxu0 0.0
    %468 = vmatpush1.msra.mxu0 %v21
    %469 = vmatprep.subr.mxu0 0.0
    %470 = vmatpush1.msra.mxu0 %v22
    %471 = vmatprep.subr.mxu0 0.0
    %472 = vmatpush1.msra.mxu0 %v23
    %473 = vmatprep.subr.mxu0 0.0
    %474 = vmatpush1.msra.mxu0 0.0
    %475 = vmatprep.subr.mxu0 0.0
    %476 = vmatpush1.msra.mxu0 0.0
    %477 = vmatprep.subr.mxu0 0.0
    %478 = vmatpush1.msra.mxu0 0.0
    %479 = vmatprep.subr.mxu0 0.0
    %480 = vmatpush1.msra.mxu0 0.0
    %481 = vmatprep.subr.mxu0 0.0
    %482 = vmatpush1.msra.mxu0 0.0
    %483 = vmatprep.subr.mxu0 0.0
    %484 = vmatpush1.msra.mxu0 0.0
    %485 = vmatprep.subr.mxu0 0.0
    %486 = vmatpush1.msra.mxu0 0.0
    %487 = vmatprep.subr.mxu0 0.0
    %488 = vmatpush1.msra.mxu0 0.0
    %489 = vmatprep.subr.mxu0 0.0
    %490 = vmatpush1.msra.mxu0 0.0
    %491 = vmatprep.subr.mxu0 0.0
    %492 = vmatpush1.msra.mxu0 0.0
    %493 = vmatprep.subr.mxu0 0.0
    %494 = vmatpush1.msra.mxu0 0.0
    %495 = vmatprep.subr.mxu0 0.0
    %496 = vmatpush1.msra.mxu0 0.0
    %497 = vmatprep.subr.mxu0 0.0
    %498 = vmatpush1.msra.mxu0 0.0
    %499 = vmatprep.subr.mxu0 0.0
    %500 = vmatpush1.msra.mxu0 0.0
    %501 = vmatprep.subr.mxu0 0.0
    %502 = vmatpush1.msra.mxu0 0.0
    %503 = vmatprep.subr.mxu0 0.0
    %504 = vmatpush1.msra.mxu0 0.0
    %505 = vmatprep.subr.mxu0 0.0
    %506 = vmatpush1.msra.mxu0 0.0
    %507 = vmatprep.subr.mxu0 0.0
    %508 = vmatpush1.msra.mxu0 0.0
    %509 = vmatprep.subr.mxu0 0.0
    %510 = vmatpush1.msra.mxu0 0.0
    %511 = vmatprep.subr.mxu0 0.0
    %512 = vmatpush1.msra.mxu0 0.0
    %513 = vmatprep.subr.mxu0 0.0
    %514 = vmatpush1.msra.mxu0 0.0
    %515 = vmatprep.subr.mxu0 0.0
    %516 = vmatpush1.msra.mxu0 0.0
    %517 = vmatprep.subr.mxu0 0.0
    %518 = vmatpush1.msra.mxu0 0.0
    %519 = vmatprep.subr.mxu0 0.0
    %520 = vmatpush1.msra.mxu0 0.0
    %521 = vmatprep.subr.mxu0 0.0
    %522 = vmatpush1.msra.mxu0 0.0
    %523 = vmatprep.subr.mxu0 0.0
    %524 = vmatpush1.msra.mxu0 0.0
    %525 = vmatprep.subr.mxu0 0.0
    %526 = vmatpush1.msra.mxu0 0.0
    %527 = vmatprep.subr.mxu0 0.0
    %528 = vmatpush1.msra.mxu0 0.0
    %529 = vmatprep.mubr.f32.mxu0 0.0
    %530 = vmatmul.mubr.f32.gmra.mrb[0].mxu0 %v463
    %v531 = vpop.f32.mrb[0].mxu0
    %v532 = vadd.f32 0.0, %v531
    %v533 = vpop.f32.mrb[0].mxu0
    %534 = vdwg.mxu0
    %v535 = vadd.f32 %v330, %v532
    %v536 = vmul.f32 %v535, 0.5
    %v537 = vtanh.pop %v536
    %v538 = vtanh.pop %v535
    %v539 = vadd.f32 %v537, 1.0
    %v540 = vmul.f32 %v539, 0.5
    %v541 = vmul.f32 %v540, %v453
    %543 = vrot.lane.b32.xlu0 %v538, 64
    %v544 = vpop.permute.xlu0 %543
    %v546 = vmul.f32 %v540, %v544
    %548 = vrot.lane.b32.xlu0 %v546, 32
    %v549 = vpop.permute.xlu0 %548
    %v551 = vadd.f32 %v541, %v549
    %v552 = vtanh.pop %v551
    %554 = vrot.lane.b32.xlu0 %v552, 64
    %v555 = vpop.permute.xlu0 %554
    %v557 = vmul.f32 %v540, %v555
    %559 = vrot.lane.b32.xlu0 %v557, 32
    %v560 = vpop.permute.xlu0 %559
    %v561 = vsel %vm363, %v560, 0
    %563 = vmatprep.subr.mxu0 0.0
    %564 = vmatpush1.msra.mxu0 %v20
    %565 = vmatprep.subr.mxu0 0.0
    %566 = vmatpush1.msra.mxu0 %v21
    %567 = vmatprep.subr.mxu0 0.0
    %568 = vmatpush1.msra.mxu0 %v22
    %569 = vmatprep.subr.mxu0 0.0
    %570 = vmatpush1.msra.mxu0 %v23
    %571 = vmatprep.subr.mxu0 0.0
    %572 = vmatpush1.msra.mxu0 0.0
    %573 = vmatprep.subr.mxu0 0.0
    %574 = vmatpush1.msra.mxu0 0.0
    %575 = vmatprep.subr.mxu0 0.0
    %576 = vmatpush1.msra.mxu0 0.0
    %577 = vmatprep.subr.mxu0 0.0
    %578 = vmatpush1.msra.mxu0 0.0
    %579 = vmatprep.subr.mxu0 0.0
    %580 = vmatpush1.msra.mxu0 0.0
    %581 = vmatprep.subr.mxu0 0.0
    %582 = vmatpush1.msra.mxu0 0.0
    %583 = vmatprep.subr.mxu0 0.0
    %584 = vmatpush1.msra.mxu0 0.0
    %585 = vmatprep.subr.mxu0 0.0
    %586 = vmatpush1.msra.mxu0 0.0
    %587 = vmatprep.subr.mxu0 0.0
    %588 = vmatpush1.msra.mxu0 0.0
    %589 = vmatprep.subr.mxu0 0.0
    %590 = vmatpush1.msra.mxu0 0.0
    %591 = vmatprep.subr.mxu0 0.0
    %592 = vmatpush1.msra.mxu0 0.0
    %593 = vmatprep.subr.mxu0 0.0
    %594 = vmatpush1.msra.mxu0 0.0
    %595 = vmatprep.subr.mxu0 0.0
    %596 = vmatpush1.msra.mxu0 0.0
    %597 = vmatprep.subr.mxu0 0.0
    %598 = vmatpush1.msra.mxu0 0.0
    %599 = vmatprep.subr.mxu0 0.0
    %600 = vmatpush1.msra.mxu0 0.0
    %601 = vmatprep.subr.mxu0 0.0
    %602 = vmatpush1.msra.mxu0 0.0
    %603 = vmatprep.subr.mxu0 0.0
    %604 = vmatpush1.msra.mxu0 0.0
    %605 = vmatprep.subr.mxu0 0.0
    %606 = vmatpush1.msra.mxu0 0.0
    %607 = vmatprep.subr.mxu0 0.0
    %608 = vmatpush1.msra.mxu0 0.0
    %609 = vmatprep.subr.mxu0 0.0
    %610 = vmatpush1.msra.mxu0 0.0
    %611 = vmatprep.subr.mxu0 0.0
    %612 = vmatpush1.msra.mxu0 0.0
    %613 = vmatprep.subr.mxu0 0.0
    %614 = vmatpush1.msra.mxu0 0.0
    %615 = vmatprep.subr.mxu0 0.0
    %616 = vmatpush1.msra.mxu0 0.0
    %617 = vmatprep.subr.mxu0 0.0
    %618 = vmatpush1.msra.mxu0 0.0
    %619 = vmatprep.subr.mxu0 0.0
    %620 = vmatpush1.msra.mxu0 0.0
    %621 = vmatprep.subr.mxu0 0.0
    %622 = vmatpush1.msra.mxu0 0.0
    %623 = vmatprep.subr.mxu0 0.0
    %624 = vmatpush1.msra.mxu0 0.0
    %625 = vmatprep.subr.mxu0 0.0
    %626 = vmatpush1.msra.mxu0 0.0
    %627 = vmatprep.mubr.f32.mxu0 0.0
    %628 = vmatmul.mubr.f32.gmra.mrb[0].mxu0 %v561
    %v629 = vpop.f32.mrb[0].mxu0
    %v630 = vadd.f32 0.0, %v629
    %v631 = vpop.f32.mrb[0].mxu0
    %632 = vdwg.mxu0
    %v633 = vadd.f32 %v335, %v630
    %v634 = vmul.f32 %v633, 0.5
    %v635 = vtanh.pop %v634
    %v636 = vtanh.pop %v633
    %v637 = vadd.f32 %v635, 1.0
    %v638 = vmul.f32 %v637, 0.5
    %v639 = vmul.f32 %v638, %v551
    %641 = vrot.lane.b32.xlu0 %v636, 64
    %v642 = vpop.permute.xlu0 %641
    %v644 = vmul.f32 %v638, %v642
    %646 = vrot.lane.b32.xlu0 %v644, 32
    %v647 = vpop.permute.xlu0 %646
    %v649 = vadd.f32 %v639, %v647
    %v650 = vtanh.pop %v649
    %652 = vrot.lane.b32.xlu0 %v650, 64
    %v653 = vpop.permute.xlu0 %652
    %v655 = vmul.f32 %v638, %v653
    %657 = vrot.lane.b32.xlu0 %v655, 32
    %v658 = vpop.permute.xlu0 %657
    %v659 = vsel %vm363, %v658, 0
    %661 = vmatprep.subr.mxu0 0.0
    %662 = vmatpush1.msra.mxu0 %v20
    %663 = vmatprep.subr.mxu0 0.0
    %664 = vmatpush1.msra.mxu0 %v21
    %665 = vmatprep.subr.mxu0 0.0
    %666 = vmatpush1.msra.mxu0 %v22
    %667 = vmatprep.subr.mxu0 0.0
    %668 = vmatpush1.msra.mxu0 %v23
    %669 = vmatprep.subr.mxu0 0.0
    %670 = vmatpush1.msra.mxu0 0.0
    %671 = vmatprep.subr.mxu0 0.0
    %672 = vmatpush1.msra.mxu0 0.0
    %673 = vmatprep.subr.mxu0 0.0
    %674 = vmatpush1.msra.mxu0 0.0
    %675 = vmatprep.subr.mxu0 0.0
    %676 = vmatpush1.msra.mxu0 0.0
    %677 = vmatprep.subr.mxu0 0.0
    %678 = vmatpush1.msra.mxu0 0.0
    %679 = vmatprep.subr.mxu0 0.0
    %680 = vmatpush1.msra.mxu0 0.0
    %681 = vmatprep.subr.mxu0 0.0
    %682 = vmatpush1.msra.mxu0 0.0
    %683 = vmatprep.subr.mxu0 0.0
    %684 = vmatpush1.msra.mxu0 0.0
    %685 = vmatprep.subr.mxu0 0.0
    %686 = vmatpush1.msra.mxu0 0.0
    %687 = vmatprep.subr.mxu0 0.0
    %688 = vmatpush1.msra.mxu0 0.0
    %689 = vmatprep.subr.mxu0 0.0
    %690 = vmatpush1.msra.mxu0 0.0
    %691 = vmatprep.subr.mxu0 0.0
    %692 = vmatpush1.msra.mxu0 0.0
    %693 = vmatprep.subr.mxu0 0.0
    %694 = vmatpush1.msra.mxu0 0.0
    %695 = vmatprep.subr.mxu0 0.0
    %696 = vmatpush1.msra.mxu0 0.0
    %697 = vmatprep.subr.mxu0 0.0
    %698 = vmatpush1.msra.mxu0 0.0
    %699 = vmatprep.subr.mxu0 0.0
    %700 = vmatpush1.msra.mxu0 0.0
    %701 = vmatprep.subr.mxu0 0.0
    %702 = vmatpush1.msra.mxu0 0.0
    %703 = vmatprep.subr.mxu0 0.0
    %704 = vmatpush1.msra.mxu0 0.0
    %705 = vmatprep.subr.mxu0 0.0
    %706 = vmatpush1.msra.mxu0 0.0
    %707 = vmatprep.subr.mxu0 0.0
    %708 = vmatpush1.msra.mxu0 0.0
    %709 = vmatprep.subr.mxu0 0.0
    %710 = vmatpush1.msra.mxu0 0.0
    %711 = vmatprep.subr.mxu0 0.0
    %712 = vmatpush1.msra.mxu0 0.0
    %713 = vmatprep.subr.mxu0 0.0
    %714 = vmatpush1.msra.mxu0 0.0
    %715 = vmatprep.subr.mxu0 0.0
    %716 = vmatpush1.msra.mxu0 0.0
    %717 = vmatprep.subr.mxu0 0.0
    %718 = vmatpush1.msra.mxu0 0.0
    %719 = vmatprep.subr.mxu0 0.0
    %720 = vmatpush1.msra.mxu0 0.0
    %721 = vmatprep.subr.mxu0 0.0
    %722 = vmatpush1.msra.mxu0 0.0
    %723 = vmatprep.subr.mxu0 0.0
    %724 = vmatpush1.msra.mxu0 0.0
    %725 = vmatprep.mubr.f32.mxu0 0.0
    %726 = vmatmul.mubr.f32.gmra.mrb[0].mxu0 %v659
    %v727 = vpop.f32.mrb[0].mxu0
    %v728 = vadd.f32 0.0, %v727
    %v729 = vpop.f32.mrb[0].mxu0
    %730 = vdwg.mxu0
    %v731 = vadd.f32 %v340, %v728
    %v732 = vmul.f32 %v731, 0.5
    %v733 = vtanh.pop %v732
    %v734 = vtanh.pop %v731
    %v735 = vadd.f32 %v733, 1.0
    %v736 = vmul.f32 %v735, 0.5
    %v737 = vmul.f32 %v736, %v649
    %739 = vrot.lane.b32.xlu0 %v734, 64
    %v740 = vpop.permute.xlu0 %739
    %v742 = vmul.f32 %v736, %v740
    %744 = vrot.lane.b32.xlu0 %v742, 32
    %v745 = vpop.permute.xlu0 %744
    %v747 = vadd.f32 %v737, %v745
    %v748 = vtanh.pop %v747
    %750 = vrot.lane.b32.xlu0 %v748, 64
    %v751 = vpop.permute.xlu0 %750
    %v753 = vmul.f32 %v736, %v751
    %755 = vrot.lane.b32.xlu0 %v753, 32
    %v756 = vpop.permute.xlu0 %755
    %v757 = vsel %vm363, %v756, 0
    %759 = vmatprep.subr.mxu0 0.0
    %760 = vmatpush1.msra.mxu0 %v20
    %761 = vmatprep.subr.mxu0 0.0
    %762 = vmatpush1.msra.mxu0 %v21
    %763 = vmatprep.subr.mxu0 0.0
    %764 = vmatpush1.msra.mxu0 %v22
    %765 = vmatprep.subr.mxu0 0.0
    %766 = vmatpush1.msra.mxu0 %v23
    %767 = vmatprep.subr.mxu0 0.0
    %768 = vmatpush1.msra.mxu0 0.0
    %769 = vmatprep.subr.mxu0 0.0
    %770 = vmatpush1.msra.mxu0 0.0
    %771 = vmatprep.subr.mxu0 0.0
    %772 = vmatpush1.msra.mxu0 0.0
    %773 = vmatprep.subr.mxu0 0.0
    %774 = vmatpush1.msra.mxu0 0.0
    %775 = vmatprep.subr.mxu0 0.0
    %776 = vmatpush1.msra.mxu0 0.0
    %777 = vmatprep.subr.mxu0 0.0
    %778 = vmatpush1.msra.mxu0 0.0
    %779 = vmatprep.subr.mxu0 0.0
    %780 = vmatpush1.msra.mxu0 0.0
    %781 = vmatprep.subr.mxu0 0.0
    %782 = vmatpush1.msra.mxu0 0.0
    %783 = vmatprep.subr.mxu0 0.0
    %784 = vmatpush1.msra.mxu0 0.0
    %785 = vmatprep.subr.mxu0 0.0
    %786 = vmatpush1.msra.mxu0 0.0
    %787 = vmatprep.subr.mxu0 0.0
    %788 = vmatpush1.msra.mxu0 0.0
    %789 = vmatprep.subr.mxu0 0.0
    %790 = vmatpush1.msra.mxu0 0.0
    %791 = vmatprep.subr.mxu0 0.0
    %792 = vmatpush1.msra.mxu0 0.0
    %793 = vmatprep.subr.mxu0 0.0
    %794 = vmatpush1.msra.mxu0 0.0
    %795 = vmatprep.subr.mxu0 0.0
    %796 = vmatpush1.msra.mxu0 0.0
    %797 = vmatprep.subr.mxu0 0.0
    %798 = vmatpush1.msra.mxu0 0.0
    %799 = vmatprep.subr.mxu0 0.0
    %800 = vmatpush1.msra.mxu0 0.0
    %801 = vmatprep.subr.mxu0 0.0
    %802 = vmatpush1.msra.mxu0 0.0
    %803 = vmatprep.subr.mxu0 0.0
    %804 = vmatpush1.msra.mxu0 0.0
    %805 = vmatprep.subr.mxu0 0.0
    %806 = vmatpush1.msra.mxu0 0.0
    %807 = vmatprep.subr.mxu0 0.0
    %808 = vmatpush1.msra.mxu0 0.0
    %809 = vmatprep.subr.mxu0 0.0
    %810 = vmatpush1.msra.mxu0 0.0
    %811 = vmatprep.subr.mxu0 0.0
    %812 = vmatpush1.msra.mxu0 0.0
    %813 = vmatprep.subr.mxu0 0.0
    %814 = vmatpush1.msra.mxu0 0.0
    %815 = vmatprep.subr.mxu0 0.0
    %816 = vmatpush1.msra.mxu0 0.0
    %817 = vmatprep.subr.mxu0 0.0
    %818 = vmatpush1.msra.mxu0 0.0
    %819 = vmatprep.subr.mxu0 0.0
    %820 = vmatpush1.msra.mxu0 0.0
    %821 = vmatprep.subr.mxu0 0.0
    %822 = vmatpush1.msra.mxu0 0.0
    %823 = vmatprep.mubr.f32.mxu0 0.0
    %824 = vmatmul.mubr.f32.gmra.mrb[0].mxu0 %v757
    %v825 = vpop.f32.mrb[0].mxu0
    %v826 = vadd.f32 0.0, %v825
    %v827 = vpop.f32.mrb[0].mxu0
    %828 = vdwg.mxu0
    %v829 = vadd.f32 %v345, %v826
    %v830 = vmul.f32 %v829, 0.5
    %v831 = vtanh.pop %v830
    %v832 = vtanh.pop %v829
    %v833 = vadd.f32 %v831, 1.0
    %v834 = vmul.f32 %v833, 0.5
    %v835 = vmul.f32 %v834, %v747
    %837 = vrot.lane.b32.xlu0 %v832, 64
    %v838 = vpop.permute.xlu0 %837
    %v840 = vmul.f32 %v834, %v838
    %842 = vrot.lane.b32.xlu0 %v840, 32
    %v843 = vpop.permute.xlu0 %842
    %v845 = vadd.f32 %v835, %v843
    %v846 = vtanh.pop %v845
    %848 = vrot.lane.b32.xlu0 %v846, 64
    %v849 = vpop.permute.xlu0 %848
    %v851 = vmul.f32 %v834, %v849
    %853 = vrot.lane.b32.xlu0 %v851, 32
    %v854 = vpop.permute.xlu0 %853
    %v855 = vsel %vm363, %v854, 0
    %857 = vmatprep.subr.mxu0 0.0
    %858 = vmatpush1.msra.mxu0 %v20
    %859 = vmatprep.subr.mxu0 0.0
    %860 = vmatpush1.msra.mxu0 %v21
    %861 = vmatprep.subr.mxu0 0.0
    %862 = vmatpush1.msra.mxu0 %v22
    %863 = vmatprep.subr.mxu0 0.0
    %864 = vmatpush1.msra.mxu0 %v23
    %865 = vmatprep.subr.mxu0 0.0
    %866 = vmatpush1.msra.mxu0 0.0
    %867 = vmatprep.subr.mxu0 0.0
    %868 = vmatpush1.msra.mxu0 0.0
    %869 = vmatprep.subr.mxu0 0.0
    %870 = vmatpush1.msra.mxu0 0.0
    %871 = vmatprep.subr.mxu0 0.0
    %872 = vmatpush1.msra.mxu0 0.0
    %873 = vmatprep.subr.mxu0 0.0
    %874 = vmatpush1.msra.mxu0 0.0
    %875 = vmatprep.subr.mxu0 0.0
    %876 = vmatpush1.msra.mxu0 0.0
    %877 = vmatprep.subr.mxu0 0.0
    %878 = vmatpush1.msra.mxu0 0.0
    %879 = vmatprep.subr.mxu0 0.0
    %880 = vmatpush1.msra.mxu0 0.0
    %881 = vmatprep.subr.mxu0 0.0
    %882 = vmatpush1.msra.mxu0 0.0
    %883 = vmatprep.subr.mxu0 0.0
    %884 = vmatpush1.msra.mxu0 0.0
    %885 = vmatprep.subr.mxu0 0.0
    %886 = vmatpush1.msra.mxu0 0.0
    %887 = vmatprep.subr.mxu0 0.0
    %888 = vmatpush1.msra.mxu0 0.0
    %889 = vmatprep.subr.mxu0 0.0
    %890 = vmatpush1.msra.mxu0 0.0
    %891 = vmatprep.subr.mxu0 0.0
    %892 = vmatpush1.msra.mxu0 0.0
    %893 = vmatprep.subr.mxu0 0.0
    %894 = vmatpush1.msra.mxu0 0.0
    %895 = vmatprep.subr.mxu0 0.0
    %896 = vmatpush1.msra.mxu0 0.0
    %897 = vmatprep.subr.mxu0 0.0
    %898 = vmatpush1.msra.mxu0 0.0
    %899 = vmatprep.subr.mxu0 0.0
    %900 = vmatpush1.msra.mxu0 0.0
    %901 = vmatprep.subr.mxu0 0.0
    %902 = vmatpush1.msra.mxu0 0.0
    %903 = vmatprep.subr.mxu0 0.0
    %904 = vmatpush1.msra.mxu0 0.0
    %905 = vmatprep.subr.mxu0 0.0
    %906 = vmatpush1.msra.mxu0 0.0
    %907 = vmatprep.subr.mxu0 0.0
    %908 = vmatpush1.msra.mxu0 0.0
    %909 = vmatprep.subr.mxu0 0.0
    %910 = vmatpush1.msra.mxu0 0.0
    %911 = vmatprep.subr.mxu0 0.0
    %912 = vmatpush1.msra.mxu0 0.0
    %913 = vmatprep.subr.mxu0 0.0
    %914 = vmatpush1.msra.mxu0 0.0
    %915 = vmatprep.subr.mxu0 0.0
    %916 = vmatpush1.msra.mxu0 0.0
    %917 = vmatprep.subr.mxu0 0.0
    %918 = vmatpush1.msra.mxu0 0.0
    %919 = vmatprep.subr.mxu0 0.0
    %920 = vmatpush1.msra.mxu0 0.0
    %921 = vmatprep.mubr.f32.mxu0 0.0
    %922 = vmatmul.mubr.f32.gmra.mrb[0].mxu0 %v855
    %v923 = vpop.f32.mrb[0].mxu0
    %v924 = vadd.f32 0.0, %v923
    %v925 = vpop.f32.mrb[0].mxu0
    %926 = vdwg.mxu0
    %v927 = vadd.f32 %v350, %v924
    %v928 = vmul.f32 %v927, 0.5
    %v929 = vtanh.pop %v928
    %v930 = vtanh.pop %v927
    %v931 = vadd.f32 %v929, 1.0
    %v932 = vmul.f32 %v931, 0.5
    %v933 = vmul.f32 %v932, %v845
    %935 = vrot.lane.b32.xlu0 %v930, 64
    %v936 = vpop.permute.xlu0 %935
    %v938 = vmul.f32 %v932, %v936
    %940 = vrot.lane.b32.xlu0 %v938, 32
    %v941 = vpop.permute.xlu0 %940
    %v943 = vadd.f32 %v933, %v941
    %v944 = vtanh.pop %v943
    %946 = vrot.lane.b32.xlu0 %v944, 64
    %v947 = vpop.permute.xlu0 %946
    %v949 = vmul.f32 %v932, %v947
    %951 = vrot.lane.b32.xlu0 %v949, 32
    %v952 = vpop.permute.xlu0 %951
    %v953 = vsel %vm363, %v952, 0
    %955 = vmatprep.subr.mxu0 0.0
    %956 = vmatpush1.msra.mxu0 %v20
    %957 = vmatprep.subr.mxu0 0.0
    %958 = vmatpush1.msra.mxu0 %v21
    %959 = vmatprep.subr.mxu0 0.0
    %960 = vmatpush1.msra.mxu0 %v22
    %961 = vmatprep.subr.mxu0 0.0
    %962 = vmatpush1.msra.mxu0 %v23
    %963 = vmatprep.subr.mxu0 0.0
    %964 = vmatpush1.msra.mxu0 0.0
    %965 = vmatprep.subr.mxu0 0.0
    %966 = vmatpush1.msra.mxu0 0.0
    %967 = vmatprep.subr.mxu0 0.0
    %968 = vmatpush1.msra.mxu0 0.0
    %969 = vmatprep.subr.mxu0 0.0
    %970 = vmatpush1.msra.mxu0 0.0
    %971 = vmatprep.subr.mxu0 0.0
    %972 = vmatpush1.msra.mxu0 0.0
    %973 = vmatprep.subr.mxu0 0.0
    %974 = vmatpush1.msra.mxu0 0.0
    %975 = vmatprep.subr.mxu0 0.0
    %976 = vmatpush1.msra.mxu0 0.0
    %977 = vmatprep.subr.mxu0 0.0
    %978 = vmatpush1.msra.mxu0 0.0
    %979 = vmatprep.subr.mxu0 0.0
    %980 = vmatpush1.msra.mxu0 0.0
    %981 = vmatprep.subr.mxu0 0.0
    %982 = vmatpush1.msra.mxu0 0.0
    %983 = vmatprep.subr.mxu0 0.0
    %984 = vmatpush1.msra.mxu0 0.0
    %985 = vmatprep.subr.mxu0 0.0
    %986 = vmatpush1.msra.mxu0 0.0
    %987 = vmatprep.subr.mxu0 0.0
    %988 = vmatpush1.msra.mxu0 0.0
    %989 = vmatprep.subr.mxu0 0.0
    %990 = vmatpush1.msra.mxu0 0.0
    %991 = vmatprep.subr.mxu0 0.0
    %992 = vmatpush1.msra.mxu0 0.0
    %993 = vmatprep.subr.mxu0 0.0
    %994 = vmatpush1.msra.mxu0 0.0
    %995 = vmatprep.subr.mxu0 0.0
    %996 = vmatpush1.msra.mxu0 0.0
    %997 = vmatprep.subr.mxu0 0.0
    %998 = vmatpush1.msra.mxu0 0.0
    %999 = vmatprep.subr.mxu0 0.0
    %1000 = vmatpush1.msra.mxu0 0.0
    %1001 = vmatprep.subr.mxu0 0.0
    %1002 = vmatpush1.msra.mxu0 0.0
    %1003 = vmatprep.subr.mxu0 0.0
    %1004 = vmatpush1.msra.mxu0 0.0
    %1005 = vmatprep.subr.mxu0 0.0
    %1006 = vmatpush1.msra.mxu0 0.0
    %1007 = vmatprep.subr.mxu0 0.0
    %1008 = vmatpush1.msra.mxu0 0.0
    %1009 = vmatprep.subr.mxu0 0.0
    %1010 = vmatpush1.msra.mxu0 0.0
    %1011 = vmatprep.subr.mxu0 0.0
    %1012 = vmatpush1.msra.mxu0 0.0
    %1013 = vmatprep.subr.mxu0 0.0
    %1014 = vmatpush1.msra.mxu0 0.0
    %1015 = vmatprep.subr.mxu0 0.0
    %1016 = vmatpush1.msra.mxu0 0.0
    %1017 = vmatprep.subr.mxu0 0.0
    %1018 = vmatpush1.msra.mxu0 0.0
    %1019 = vmatprep.mubr.f32.mxu0 0.0
    %1020 = vmatmul.mubr.f32.gmra.mrb[0].mxu0 %v953
    %v1021 = vpop.f32.mrb[0].mxu0
    %v1022 = vadd.f32 0.0, %v1021
    %v1023 = vpop.f32.mrb[0].mxu0
    %1024 = vdwg.mxu0
    %v1025 = vadd.f32 %v355, %v1022
    %v1026 = vmul.f32 %v1025, 0.5
    %v1027 = vtanh.pop %v1026
    %v1028 = vtanh.pop %v1025
    %v1029 = vadd.f32 %v1027, 1.0
    %v1030 = vmul.f32 %v1029, 0.5
    %v1031 = vmul.f32 %v1030, %v943
    %1033 = vrot.lane.b32.xlu0 %v1028, 64
    %v1034 = vpop.permute.xlu0 %1033
    %v1036 = vmul.f32 %v1030, %v1034
    %1038 = vrot.lane.b32.xlu0 %v1036, 32
    %v1039 = vpop.permute.xlu0 %1038
    %v1041 = vadd.f32 %v1031, %v1039
    %v1042 = vtanh.pop %v1041
    %1044 = vrot.lane.b32.xlu0 %v1042, 64
    %v1045 = vpop.permute.xlu0 %1044
    %v1047 = vmul.f32 %v1030, %v1045
    %1049 = vrot.lane.b32.xlu0 %v1047, 32
    %v1050 = vpop.permute.xlu0 %1049
    %v1051 = vsel %vm363, %v1050, 0
    %1053 = vmatprep.subr.mxu0 0.0
    %1054 = vmatpush1.msra.mxu0 %v20
    %1055 = vmatprep.subr.mxu0 0.0
    %1056 = vmatpush1.msra.mxu0 %v21
    %1057 = vmatprep.subr.mxu0 0.0
    %1058 = vmatpush1.msra.mxu0 %v22
    %1059 = vmatprep.subr.mxu0 0.0
    %1060 = vmatpush1.msra.mxu0 %v23
    %1061 = vmatprep.subr.mxu0 0.0
    %1062 = vmatpush1.msra.mxu0 0.0
    %1063 = vmatprep.subr.mxu0 0.0
    %1064 = vmatpush1.msra.mxu0 0.0
    %1065 = vmatprep.subr.mxu0 0.0
    %1066 = vmatpush1.msra.mxu0 0.0
    %1067 = vmatprep.subr.mxu0 0.0
    %1068 = vmatpush1.msra.mxu0 0.0
    %1069 = vmatprep.subr.mxu0 0.0
    %1070 = vmatpush1.msra.mxu0 0.0
    %1071 = vmatprep.subr.mxu0 0.0
    %1072 = vmatpush1.msra.mxu0 0.0
    %1073 = vmatprep.subr.mxu0 0.0
    %1074 = vmatpush1.msra.mxu0 0.0
    %1075 = vmatprep.subr.mxu0 0.0
    %1076 = vmatpush1.msra.mxu0 0.0
    %1077 = vmatprep.subr.mxu0 0.0
    %1078 = vmatpush1.msra.mxu0 0.0
    %1079 = vmatprep.subr.mxu0 0.0
    %1080 = vmatpush1.msra.mxu0 0.0
    %1081 = vmatprep.subr.mxu0 0.0
    %1082 = vmatpush1.msra.mxu0 0.0
    %1083 = vmatprep.subr.mxu0 0.0
    %1084 = vmatpush1.msra.mxu0 0.0
    %1085 = vmatprep.subr.mxu0 0.0
    %1086 = vmatpush1.msra.mxu0 0.0
    %1087 = vmatprep.subr.mxu0 0.0
    %1088 = vmatpush1.msra.mxu0 0.0
    %1089 = vmatprep.subr.mxu0 0.0
    %1090 = vmatpush1.msra.mxu0 0.0
    %1091 = vmatprep.subr.mxu0 0.0
    %1092 = vmatpush1.msra.mxu0 0.0
    %1093 = vmatprep.subr.mxu0 0.0
    %1094 = vmatpush1.msra.mxu0 0.0
    %1095 = vmatprep.subr.mxu0 0.0
    %1096 = vmatpush1.msra.mxu0 0.0
    %1097 = vmatprep.subr.mxu0 0.0
    %1098 = vmatpush1.msra.mxu0 0.0
    %1099 = vmatprep.subr.mxu0 0.0
    %1100 = vmatpush1.msra.mxu0 0.0
    %1101 = vmatprep.subr.mxu0 0.0
    %1102 = vmatpush1.msra.mxu0 0.0
    %1103 = vmatprep.subr.mxu0 0.0
    %1104 = vmatpush1.msra.mxu0 0.0
    %1105 = vmatprep.subr.mxu0 0.0
    %1106 = vmatpush1.msra.mxu0 0.0
    %1107 = vmatprep.subr.mxu0 0.0
    %1108 = vmatpush1.msra.mxu0 0.0
    %1109 = vmatprep.subr.mxu0 0.0
    %1110 = vmatpush1.msra.mxu0 0.0
    %1111 = vmatprep.subr.mxu0 0.0
    %1112 = vmatpush1.msra.mxu0 0.0
    %1113 = vmatprep.subr.mxu0 0.0
    %1114 = vmatpush1.msra.mxu0 0.0
    %1115 = vmatprep.subr.mxu0 0.0
    %1116 = vmatpush1.msra.mxu0 0.0
    %1117 = vmatprep.mubr.f32.mxu0 0.0
    %1118 = vmatmul.mubr.f32.gmra.mrb[0].mxu0 %v1051
    %v1119 = vpop.f32.mrb[0].mxu0
    %v1120 = vadd.f32 0.0, %v1119
    %v1121 = vpop.f32.mrb[0].mxu0
    %1122 = vdwg.mxu0
    %v1123 = vadd.f32 %v360, %v1120
    %v1124 = vmul.f32 %v1123, 0.5
    %v1125 = vtanh.pop %v1124
    %v1126 = vtanh.pop %v1123
    %v1127 = vadd.f32 %v1125, 1.0
    %v1128 = vmul.f32 %v1127, 0.5
    %v1129 = vmul.f32 %v1128, %v1041
    %1131 = vrot.lane.b32.xlu0 %v1126, 64
    %v1132 = vpop.permute.xlu0 %1131
    %v1134 = vmul.f32 %v1128, %v1132
    %1136 = vrot.lane.b32.xlu0 %v1134, 32
    %v1137 = vpop.permute.xlu0 %1136
    %v1139 = vadd.f32 %v1129, %v1137
    %v1140 = vtanh.pop %v1139
    %1142 = vrot.lane.b32.xlu0 %v1140, 64
    %v1143 = vpop.permute.xlu0 %1142
    %v1145 = vmul.f32 %v1128, %v1143
    %v1146 = vlaneseq
    %v1147 = vshrl.u32 %v1146, 7
    %v1148 = vsub.s32 0, %v1147
    %v1149 = vrot.slane %v29, %v1148
    %1151 = vrot.lane.b32.xlu0 %v1145, 32
    %v1152 = vpop.permute.xlu0 %1151
    %v1153 = vsel %vm363, %v1152, 0
    %1155 = vmatprep.subr.mxu0 0.0
    %1156 = vmatpush1.msra.mxu0 %v25
    %1157 = vmatprep.subr.mxu0 0.0
    %1158 = vmatpush1.msra.mxu0 %v26
    %1159 = vmatprep.subr.mxu0 0.0
    %1160 = vmatpush1.msra.mxu0 %v27
    %1161 = vmatprep.subr.mxu0 0.0
    %1162 = vmatpush1.msra.mxu0 %v28
    %1163 = vmatprep.subr.mxu0 0.0
    %1164 = vmatpush1.msra.mxu0 0.0
    %1165 = vmatprep.subr.mxu0 0.0
    %1166 = vmatpush1.msra.mxu0 0.0
    %1167 = vmatprep.subr.mxu0 0.0
    %1168 = vmatpush1.msra.mxu0 0.0
    %1169 = vmatprep.subr.mxu0 0.0
    %1170 = vmatpush1.msra.mxu0 0.0
    %1171 = vmatprep.subr.mxu0 0.0
    %1172 = vmatpush1.msra.mxu0 0.0
    %1173 = vmatprep.subr.mxu0 0.0
    %1174 = vmatpush1.msra.mxu0 0.0
    %1175 = vmatprep.subr.mxu0 0.0
    %1176 = vmatpush1.msra.mxu0 0.0
    %1177 = vmatprep.subr.mxu0 0.0
    %1178 = vmatpush1.msra.mxu0 0.0
    %1179 = vmatprep.subr.mxu0 0.0
    %1180 = vmatpush1.msra.mxu0 0.0
    %1181 = vmatprep.subr.mxu0 0.0
    %1182 = vmatpush1.msra.mxu0 0.0
    %1183 = vmatprep.subr.mxu0 0.0
    %1184 = vmatpush1.msra.mxu0 0.0
    %1185 = vmatprep.subr.mxu0 0.0
    %1186 = vmatpush1.msra.mxu0 0.0
    %1187 = vmatprep.subr.mxu0 0.0
    %1188 = vmatpush1.msra.mxu0 0.0
    %1189 = vmatprep.subr.mxu0 0.0
    %1190 = vmatpush1.msra.mxu0 0.0
    %1191 = vmatprep.subr.mxu0 0.0
    %1192 = vmatpush1.msra.mxu0 0.0
    %1193 = vmatprep.subr.mxu0 0.0
    %1194 = vmatpush1.msra.mxu0 0.0
    %1195 = vmatprep.subr.mxu0 0.0
    %1196 = vmatpush1.msra.mxu0 0.0
    %1197 = vmatprep.subr.mxu0 0.0
    %1198 = vmatpush1.msra.mxu0 0.0
    %1199 = vmatprep.subr.mxu0 0.0
    %1200 = vmatpush1.msra.mxu0 0.0
    %1201 = vmatprep.subr.mxu0 0.0
    %1202 = vmatpush1.msra.mxu0 0.0
    %1203 = vmatprep.subr.mxu0 0.0
    %1204 = vmatpush1.msra.mxu0 0.0
    %1205 = vmatprep.subr.mxu0 0.0
    %1206 = vmatpush1.msra.mxu0 0.0
    %1207 = vmatprep.subr.mxu0 0.0
    %1208 = vmatpush1.msra.mxu0 0.0
    %1209 = vmatprep.subr.mxu0 0.0
    %1210 = vmatpush1.msra.mxu0 0.0
    %1211 = vmatprep.subr.mxu0 0.0
    %1212 = vmatpush1.msra.mxu0 0.0
    %1213 = vmatprep.subr.mxu0 0.0
    %1214 = vmatpush1.msra.mxu0 0.0
    %1215 = vmatprep.subr.mxu0 0.0
    %1216 = vmatpush1.msra.mxu0 0.0
    %1217 = vmatprep.subr.mxu0 0.0
    %1218 = vmatpush1.msra.mxu0 0.0
    %1219 = vmatprep.mubr.f32.mxu0 0.0
    %1220 = vmatmul.mubr.f32.gmra.mrb[0].mxu0 %v1153
    %v1221 = vpop.f32.mrb[0].mxu0
    %v1222 = vadd.f32 %v1149, %v1221
    %v1223 = vpop.f32.mrb[0].mxu0
    %1224 = vdwg.mxu0
    %v1225 = vmul.f32 %v1222, 0.5
    %v1226 = vtanh.pop %v1225
    %v1227 = vadd.f32 %v1226, 1.0
    %v1228 = vmul.f32 %v1227, 0.5
    %1229 = vst [vmem:[#allocation2] sm:$0xff] %v1228
    // Predicated region
    $region18: #{tpu_custom_call.1} parent=1 // pred_check
      _
    $region19: #{tpu_custom_call.1} parent=1 // pred_check_branch
      %1231 = sbr.rel (0) target = $region21
    $region20: #{tpu_custom_call.1} parent=1 // pred_region
      %s1233 = ssub.s32 128, 128
      %1234 = vsyncadd [#allocation3], %s1233
      %s1236 = sshll.u32 [#allocation2], 4
      %s1237 = int_to_ptr.vmem [resolvable:$true] %s1236
      %1239 = dma.vmem_to_hbm [thread:$0]  %s1237, 128, %s4, [#allocation3]
    $region21: #{tpu_custom_call.1} parent=1 // pred_fallthru
      _
    // Predicated region
    $region22: #{tpu_custom_call.1} parent=1 // pred_check
      _
    $region23: #{tpu_custom_call.1} parent=1 // pred_check_branch
      %1241 = sbr.rel (0) target = $region25
    $region24: #{tpu_custom_call.1} parent=1 // pred_region
      %1242 = dma.done [#allocation3], 128
    $region25: #{tpu_custom_call.1} parent=1 // pred_fallthru
      _
    %1243 = vsyncpa [#allocation3], 1

</llo_original>
